<compile_context>
chip_gen: v7x
topology: tpu7x:2x2x1
jax: 0.10.0
libtpu: 0.0.40
codegen_flags: <defaults>
</compile_context>

<pallas_src>
import jax
import jax.numpy as jnp
from jax import lax
from jax.experimental import pallas as pl
from jax.experimental.pallas import tpu as pltpu

B = 8           # number of independent graphs per pallas_call (grid axis)
N = 16          # number of graph nodes (acts as the LSTM "batch")
D = 32          # input_dim == hidden dim
DH = D // 2     # hidden dim of the MLP head
C = 4           # output_dim (number of classes)
LANES = 128
EPS = 1e-5
NEG_SLOPE = 0.2     # GATConv default leaky-relu slope
NEG_BIG = -1e30

# ---- packed parameter buffer layout (rows of a (256, 128) f32 array) ----
R_W1 = 0                 # (D, D)    w1^T with bn1 scale folded, lanes 0:D
R_WG = R_W1 + D          # (D, D+1)  [wg^T | vdst], lanes 0:D+1
R_WIH = R_WG + D         # 4 x (D, 3D)  LSTM W_ih^T, gates i|g|o (f dropped),
                         #              i/o columns pre-scaled by 0.5
R_WL1 = R_WIH + 4 * D    # (D, DH)
R_WL2 = R_WL1 + D        # (DH, 128)  wl2^T, lanes >= C are zero
R_VEC = R_WL2 + DH       # 7 vector rows
(V_B1, V_SH1, V_VSRC, V_SC2, V_SH2, V_BL1, V_BL2) = range(R_VEC, R_VEC + 7)
R_LSTMB = R_VEC + 7      # 4 x (1, 3D) combined LSTM biases (i|g|o), i/o * 0.5
P_ROWS = 256


def lstm_gdc_kernel(x_ref, an_ref, p_ref, out_ref):
    f32 = jnp.float32
    x = x_ref[...]                       # (N, D) node features of this graph
    anorm = an_ref[...]                  # (N, N) = D^{-1/2} A^T D^{-1/2} (self loops in)

    # ---- GraphDiffusionConv: Linear (bn1 scale folded) + normalized 'add' agg
    xl = jnp.dot(x, p_ref[R_W1:R_W1 + D, 0:D], preferred_element_type=f32) \
         + p_ref[V_B1:V_B1 + 1, 0:D]
    h = jnp.dot(anorm, xl, preferred_element_type=f32)
    # bn1 shift (scale already folded) + relu; eval-mode dropout == identity
    h = jnp.maximum(h + p_ref[V_SH1:V_SH1 + 1, 0:D], 0.0)

    # ---- GATConv (single head): vdst folded as an extra column of the linear
    hgad = jnp.dot(h, p_ref[R_WG:R_WG + D, 0:D + 1], preferred_element_type=f32)
    hg = hgad[:, 0:D]                                 # (N, D)  W h_j
    a_d = hgad[:, D:D + 1]                            # (N, 1)  att_dst . (W h_i)
    dn = (((1,), (1,)), ((), ()))                     # contract last dims (rhs^T matmul)
    a_s = lax.dot_general(p_ref[V_VSRC:V_VSRC + 1, 0:D], h, dn,
                          preferred_element_type=f32)  # (1, N) att_src . (W h_j)
    s = a_d + a_s                                     # s[i, j]: score of edge j -> i
    s = jnp.where(s > 0, s, NEG_SLOPE * s)            # leaky relu
    s = jnp.where(anorm > 0.0, s, NEG_BIG)            # mask non-edges
    e = jnp.exp(s - jnp.max(s, axis=1, keepdims=True))   # masked entries underflow to 0
    alpha = e * pl.reciprocal(jnp.sum(e, axis=1, keepdims=True), approx=True)
    h2 = jnp.dot(alpha, hg, preferred_element_type=f32)  # (N, D)
    # bn2 (+ GAT bias) folded into one FMA, then relu
    h2 = jnp.maximum(h2 * p_ref[V_SC2:V_SC2 + 1, 0:D]
                     + p_ref[V_SH2:V_SH2 + 1, 0:D], 0.0)

    # ---- 4-layer LSTM, seq_len == 1, zero (h0, c0):
    # gates = x @ W_ih^T + (b_ih + b_hh); c = sig(i)*tanh(g); h = sig(o)*tanh(c).
    # W_hh and the forget gate drop out (h0 == 0, c0 == 0).  i/o gate columns were
    # pre-scaled by 0.5 so sigmoid(z) = 0.5*tanh(z/2) + 0.5 comes from one wide tanh.
    hh = h2
    for l in range(4):
        r = R_WIH + l * D
        gates = jnp.dot(hh, p_ref[r:r + D, 0:3 * D], preferred_element_type=f32) \
                + p_ref[R_LSTMB + l:R_LSTMB + l + 1, 0:3 * D]        # (N, 3D)
        t = jnp.tanh(gates)
        i_g = 0.5 * t[:, 0:D] + 0.5
        g_g = t[:, D:2 * D]
        o_g = 0.5 * t[:, 2 * D:3 * D] + 0.5
        hh = o_g * jnp.tanh(i_g * g_g)

    # ---- MLP head: Linear(D, D/2) -> ReLU -> Linear(D/2, C); classes padded to
    # 128 lanes (-1e30 bias on the padding) so log_softmax + store are lane-dense.
    z1 = jnp.maximum(
        jnp.dot(hh, p_ref[R_WL1:R_WL1 + D, 0:DH], preferred_element_type=f32)
        + p_ref[V_BL1:V_BL1 + 1, 0:DH], 0.0)                          # (N, DH)
    z = jnp.dot(z1, p_ref[R_WL2:R_WL2 + DH, :], preferred_element_type=f32) \
        + p_ref[V_BL2:V_BL2 + 1, :]                                   # (N, 128)
    # eval-mode dropout == identity; log_softmax over the (padded) class dim
    zmax = jnp.max(z, axis=1, keepdims=True)
    lse = jnp.log(jnp.sum(jnp.exp(z - zmax), axis=1, keepdims=True)) + zmax
    out_ref[...] = z - lse


@jax.jit
def lstm_gdc_forward(x, anorm, packed):
    """x: (B, N, D), anorm: (B, N, N), packed: (256, 128).
    Returns (B, N, 128) log-softmax with class lanes 0:C valid (padding ~ -1e30)."""
    b = x.shape[0]
    return pl.pallas_call(
        lstm_gdc_kernel,
        out_shape=jax.ShapeDtypeStruct((b, N, LANES), jnp.float32),
        grid=(b,),
        in_specs=[
            pl.BlockSpec((None, N, D), lambda i: (i, 0, 0)),       # per-graph features
            pl.BlockSpec((None, N, N), lambda i: (i, 0, 0)),       # per-graph norm. adj
            pl.BlockSpec((P_ROWS, LANES), lambda i: (0, 0)),       # weights stay resident
        ],
        out_specs=pl.BlockSpec((None, N, LANES), lambda i: (i, 0, 0)),
        compiler_params=pltpu.CompilerParams(
            dimension_semantics=("parallel",)),                    # megacore on v7x
    )(x, anorm, packed)


def init_params(key):
    """Parameters in natural PyTorch layout (then folded/packed by pack_params)."""
    ks = jax.random.split(key, 16)

    def nrm(k, shape, scale=0.1):
        return (scale * jax.random.normal(k, shape)).astype(jnp.float32)

    w1 = nrm(ks[0], (D, D))
    b1 = nrm(ks[1], (1, D))
    bn1g = 1.0 + nrm(ks[2], (1, D))
    bn1b = nrm(ks[3], (1, D))
    bn1m = nrm(ks[4], (1, D))
    bn1v = 1.0 + jnp.abs(nrm(ks[5], (1, D)))
    wg = nrm(ks[6], (D, D))
    asrc = nrm(ks[7], (1, D))
    adst = nrm(ks[8], (1, D))
    gbias = nrm(ks[9], (1, D))
    bn2g = 1.0 + nrm(ks[10], (1, D))
    bn2b = nrm(ks[11], (1, D))
    bn2m = nrm(ks[12], (1, D))
    bn2v = 1.0 + jnp.abs(nrm(ks[13], (1, D)))
    kl = jax.random.split(ks[14], 12)
    wih = jnp.stack([nrm(kl[l], (4 * D, D)) for l in range(4)])          # (4, 4D, D)
    blstm = jnp.stack([nrm(kl[4 + l], (1, 4 * D)) + nrm(kl[8 + l], (1, 4 * D))
                       for l in range(4)])                               # (4, 1, 4D)
    km = jax.random.split(ks[15], 4)
    wl1 = nrm(km[0], (DH, D))
    bl1 = nrm(km[1], (1, DH))
    wl2 = nrm(km[2], (C, DH))
    bl2 = nrm(km[3], (1, C))
    return (w1, b1, bn1g, bn1b, bn1m, bn1v, wg, asrc, adst, gbias,
            bn2g, bn2b, bn2m, bn2v, wih, blstm, wl1, bl1, wl2, bl2)


def pack_params(params):
    """Fold BN/bias constants, pre-transpose weights and pack into one (256,128) buffer."""
    (w1, b1, bn1g, bn1b, bn1m, bn1v, wg, asrc, adst, gbias,
     bn2g, bn2b, bn2m, bn2v, wih, blstm, wl1, bl1, wl2, bl2) = params

    s1 = bn1g * lax.rsqrt(bn1v + EPS)                 # bn1 eval scale (per channel)
    sh1 = bn1b - bn1m * s1                            # bn1 eval shift
    s2 = bn2g * lax.rsqrt(bn2v + EPS)                 # bn2 eval scale
    sh2 = (gbias - bn2m) * s2 + bn2b                  # bn2 shift with GAT bias folded in

    wg_t = wg.T                                       # (D, D)
    vsrc = jnp.dot(wg_t, asrc.reshape(D, 1)).reshape(D)
    vdst = jnp.dot(wg_t, adst.reshape(D, 1)).reshape(D)

    p = jnp.zeros((P_ROWS, LANES), jnp.float32)
    p = p.at[R_W1:R_W1 + D, 0:D].set(w1.T * s1)       # fold bn1 scale into w1
    p = p.at[R_WG:R_WG + D, 0:D].set(wg_t)
    p = p.at[R_WG:R_WG + D, D].set(vdst)              # vdst folded as extra column
    for l in range(4):
        w = wih[l]                                    # (4D, D) rows: i | f | g | o
        w3 = jnp.concatenate([0.5 * w[0:D],           # i gate, pre-scaled for tanh trick
                              w[2 * D:3 * D],         # g gate
                              0.5 * w[3 * D:4 * D]],  # o gate, pre-scaled
                             axis=0).T                # (D, 3D)
        b = blstm[l].reshape(4 * D)
        b3 = jnp.concatenate([0.5 * b[0:D], b[2 * D:3 * D], 0.5 * b[3 * D:4 * D]])
        p = p.at[R_WIH + l * D:R_WIH + (l + 1) * D, 0:3 * D].set(w3)
        p = p.at[R_LSTMB + l, 0:3 * D].set(b3)
    p = p.at[R_WL1:R_WL1 + D, 0:DH].set(wl1.T)
    p = p.at[R_WL2:R_WL2 + DH, 0:C].set(wl2.T)        # lanes >= C stay zero

    p = p.at[V_B1, 0:D].set((b1 * s1).reshape(D))     # bn1 scale folded into b1
    p = p.at[V_SH1, 0:D].set(sh1.reshape(D))
    p = p.at[V_VSRC, 0:D].set(vsrc)
    p = p.at[V_SC2, 0:D].set(s2.reshape(D))
    p = p.at[V_SH2, 0:D].set(sh2.reshape(D))
    p = p.at[V_BL1, 0:DH].set(bl1.reshape(DH))
    p = p.at[V_BL2, :].set(jnp.full((LANES,), NEG_BIG, jnp.float32))
    p = p.at[V_BL2, 0:C].set(bl2.reshape(C))          # padded classes get -1e30 bias
    return p


def build_graphs(key, b, n):
    """B random undirected graphs with self loops, returned as the symmetrically
    normalized transposed adjacency D^{-1/2} A^T D^{-1/2} (graph-static, built once).
    The GAT edge mask is recovered in-kernel as (anorm > 0)."""
    def one(kk):
        pmat = jax.random.uniform(kk, (n, n))
        upper = jnp.triu((pmat < 0.3).astype(jnp.float32), k=1)
        a = jnp.minimum(upper + upper.T, 1.0) + jnp.eye(n, dtype=jnp.float32)
        deg = jnp.sum(a, axis=1, keepdims=True)           # out-degree, >= 1 (self loop)
        dinv = lax.rsqrt(deg)                             # (n, 1)
        return (dinv * a.T * dinv.reshape(1, n)).astype(jnp.float32)
    return jax.vmap(one)(jax.random.split(key, b))        # (B, n, n)


if __name__ == "__main__":
    key = jax.random.PRNGKey(0)
    kx, ka, kp = jax.random.split(key, 3)
    x = jax.random.normal(kx, (B, N, D), dtype=jnp.float32)   # B graphs' node features
    anorm = build_graphs(ka, B, N)                            # (B, N, N) normalized adj
    packed = pack_params(init_params(kp))                     # (256, 128) weight buffer

    out_padded = lstm_gdc_forward(x, anorm, packed)           # (B, N, 128)
    out_padded = jax.block_until_ready(out_padded)
    out = out_padded[:, :, :C]                                # valid class lanes

    assert out.shape == (B, N, C) and out.dtype == jnp.float32
    assert bool(jnp.all(jnp.isfinite(out)))
    # log-softmax rows must (approximately) exponentiate-sum to 1
    assert bool(jnp.all(jnp.abs(jnp.sum(jnp.exp(out), axis=-1) - 1.0) < 1e-3))
    print("KERNEL_OK")
</pallas_src>

<mosaic_0001>
module attributes {stable_mosaic.version = 11 : i64} {
  func.func @lstm_gdc_kernel(%arg0: i32, %arg1: memref<1x16x32xf32, #tpu.memory_space<vmem>>, %arg2: memref<1x16x16xf32, #tpu.memory_space<vmem>>, %arg3: memref<256x128xf32, #tpu.memory_space<vmem>>, %arg4: memref<1x16x128xf32, #tpu.memory_space<vmem>>) attributes {dimension_semantics = [#tpu.dimension_semantics<parallel>], iteration_bounds = array<i64: 8>, scalar_prefetch = 0 : i64, scratch_operands = 0 : i64, tpu.core_type = #tpu.core_type<tc>, window_params = [{transform_indices = @transform_0, window_bounds = array<i64: 1, 16, 32>}, {transform_indices = @transform_1, window_bounds = array<i64: 1, 16, 16>}, {pipeline_mode = #tpu.pipeline_mode<synchronous>, transform_indices = @transform_2, window_bounds = array<i64: 256, 128>}, {transform_indices = @transform_3, window_bounds = array<i64: 1, 16, 128>}]} {
    %c0 = arith.constant 0 : index
    %c0_0 = arith.constant 0 : index
    %c0_1 = arith.constant 0 : index
    %0 = vector.load %arg1[%c0, %c0_0, %c0_1] : memref<1x16x32xf32, #tpu.memory_space<vmem>>, vector<1x16x32xf32>
    %1 = vector.shape_cast %0 : vector<1x16x32xf32> to vector<16x32xf32>
    %c0_2 = arith.constant 0 : index
    %c0_3 = arith.constant 0 : index
    %c0_4 = arith.constant 0 : index
    %2 = vector.load %arg2[%c0_2, %c0_3, %c0_4] : memref<1x16x16xf32, #tpu.memory_space<vmem>>, vector<1x16x16xf32>
    %3 = vector.shape_cast %2 : vector<1x16x16xf32> to vector<16x16xf32>
    %c0_5 = arith.constant 0 : index
    %c0_6 = arith.constant 0 : index
    %4 = vector.load %arg3[%c0_5, %c0_6] : memref<256x128xf32, #tpu.memory_space<vmem>>, vector<32x32xf32>
    %cst = arith.constant dense<0.000000e+00> : vector<16x32xf32>
    %5 = tpu.matmul %1, %4, %cst {dimension_numbers = #tpu.dot_dimension_numbers<[1], [0], [0], [1], [0, 0, 1, 1], [], []>} : vector<16x32xf32>, vector<32x32xf32>, vector<16x32xf32> -> vector<16x32xf32>
    %c240 = arith.constant 240 : index
    %c0_7 = arith.constant 0 : index
    %6 = vector.load %arg3[%c240, %c0_7] : memref<256x128xf32, #tpu.memory_space<vmem>>, vector<1x32xf32>
    %7 = vector.broadcast %6 : vector<1x32xf32> to vector<16x32xf32>
    %8 = arith.addf %5, %7 : vector<16x32xf32>
    %cst_8 = arith.constant dense<0.000000e+00> : vector<16x32xf32>
    %9 = tpu.matmul %3, %8, %cst_8 {dimension_numbers = #tpu.dot_dimension_numbers<[1], [0], [0], [1], [0, 0, 1, 1], [], []>} : vector<16x16xf32>, vector<16x32xf32>, vector<16x32xf32> -> vector<16x32xf32>
    %c241 = arith.constant 241 : index
    %c0_9 = arith.constant 0 : index
    %10 = vector.load %arg3[%c241, %c0_9] : memref<256x128xf32, #tpu.memory_space<vmem>>, vector<1x32xf32>
    %11 = vector.broadcast %10 : vector<1x32xf32> to vector<16x32xf32>
    %12 = arith.addf %9, %11 : vector<16x32xf32>
    %cst_10 = arith.constant 0.000000e+00 : f32
    %13 = vector.broadcast %cst_10 : f32 to vector<16x32xf32>
    %14 = arith.maximumf %12, %13 : vector<16x32xf32>
    %c32 = arith.constant 32 : index
    %c0_11 = arith.constant 0 : index
    %15 = vector.load %arg3[%c32, %c0_11] : memref<256x128xf32, #tpu.memory_space<vmem>>, vector<32x33xf32>
    %cst_12 = arith.constant dense<0.000000e+00> : vector<16x33xf32>
    %16 = tpu.matmul %14, %15, %cst_12 {dimension_numbers = #tpu.dot_dimension_numbers<[1], [0], [0], [1], [0, 0, 1, 1], [], []>} : vector<16x32xf32>, vector<32x33xf32>, vector<16x33xf32> -> vector<16x33xf32>
    %17 = vector.extract_strided_slice %16 {offsets = [0, 0], sizes = [16, 32], strides = [1, 1]} : vector<16x33xf32> to vector<16x32xf32>
    %18 = vector.extract_strided_slice %16 {offsets = [0, 32], sizes = [16, 1], strides = [1, 1]} : vector<16x33xf32> to vector<16x1xf32>
    %c242 = arith.constant 242 : index
    %c0_13 = arith.constant 0 : index
    %19 = vector.load %arg3[%c242, %c0_13] : memref<256x128xf32, #tpu.memory_space<vmem>>, vector<1x32xf32>
    %cst_14 = arith.constant dense<0.000000e+00> : vector<1x16xf32>
    %20 = tpu.matmul %19, %14, %cst_14 {dimension_numbers = #tpu.dot_dimension_numbers<[1], [1], [0], [0], [0, 0, 1, 0], [], []>} : vector<1x32xf32>, vector<16x32xf32>, vector<1x16xf32> -> vector<1x16xf32>
    %21 = vector.broadcast %18 : vector<16x1xf32> to vector<16x16xf32>
    %22 = vector.broadcast %20 : vector<1x16xf32> to vector<16x16xf32>
    %23 = arith.addf %21, %22 : vector<16x16xf32>
    %cst_15 = arith.constant 0.000000e+00 : f32
    %24 = vector.broadcast %cst_15 : f32 to vector<16x16xf32>
    %25 = arith.cmpf ogt, %23, %24 : vector<16x16xf32>
    %cst_16 = arith.constant 2.000000e-01 : f32
    %26 = vector.broadcast %cst_16 : f32 to vector<16x16xf32>
    %27 = arith.mulf %26, %23 : vector<16x16xf32>
    %28 = arith.select %25, %23, %27 : vector<16x16xi1>, vector<16x16xf32>
    %cst_17 = arith.constant 0.000000e+00 : f32
    %29 = vector.broadcast %cst_17 : f32 to vector<16x16xf32>
    %30 = arith.cmpf ogt, %3, %29 : vector<16x16xf32>
    %cst_18 = arith.constant -1.000000e+30 : f32
    %31 = vector.broadcast %cst_18 : f32 to vector<16x16xf32>
    %32 = arith.select %30, %28, %31 : vector<16x16xi1>, vector<16x16xf32>
    %cst_19 = arith.constant dense<0xFF800000> : vector<16xf32>
    %33 = vector.multi_reduction <maximumf>, %32, %cst_19 [1] : vector<16x16xf32> to vector<16xf32>
    %34 = vector.shape_cast %33 : vector<16xf32> to vector<16x1xf32>
    %35 = vector.broadcast %34 : vector<16x1xf32> to vector<16x16xf32>
    %36 = arith.subf %32, %35 : vector<16x16xf32>
    %37 = math.exp %36 : vector<16x16xf32>
    %cst_20 = arith.constant dense<0.000000e+00> : vector<16xf32>
    %38 = vector.multi_reduction <add>, %37, %cst_20 [1] : vector<16x16xf32> to vector<16xf32>
    %39 = vector.shape_cast %38 : vector<16xf32> to vector<16x1xf32>
    %40 = tpu.reciprocal %39 {approx = true} : vector<16x1xf32> -> vector<16x1xf32>
    %41 = vector.broadcast %40 : vector<16x1xf32> to vector<16x16xf32>
    %42 = arith.mulf %37, %41 : vector<16x16xf32>
    %cst_21 = arith.constant dense<0.000000e+00> : vector<16x32xf32>
    %43 = tpu.matmul %42, %17, %cst_21 {dimension_numbers = #tpu.dot_dimension_numbers<[1], [0], [0], [1], [0, 0, 1, 1], [], []>} : vector<16x16xf32>, vector<16x32xf32>, vector<16x32xf32> -> vector<16x32xf32>
    %c243 = arith.constant 243 : index
    %c0_22 = arith.constant 0 : index
    %44 = vector.load %arg3[%c243, %c0_22] : memref<256x128xf32, #tpu.memory_space<vmem>>, vector<1x32xf32>
    %45 = vector.broadcast %44 : vector<1x32xf32> to vector<16x32xf32>
    %46 = arith.mulf %43, %45 : vector<16x32xf32>
    %c244 = arith.constant 244 : index
    %c0_23 = arith.constant 0 : index
    %47 = vector.load %arg3[%c244, %c0_23] : memref<256x128xf32, #tpu.memory_space<vmem>>, vector<1x32xf32>
    %48 = vector.broadcast %47 : vector<1x32xf32> to vector<16x32xf32>
    %49 = arith.addf %46, %48 : vector<16x32xf32>
    %cst_24 = arith.constant 0.000000e+00 : f32
    %50 = vector.broadcast %cst_24 : f32 to vector<16x32xf32>
    %51 = arith.maximumf %49, %50 : vector<16x32xf32>
    %c64 = arith.constant 64 : index
    %c0_25 = arith.constant 0 : index
    %52 = vector.load %arg3[%c64, %c0_25] : memref<256x128xf32, #tpu.memory_space<vmem>>, vector<32x96xf32>
    %cst_26 = arith.constant dense<0.000000e+00> : vector<16x96xf32>
    %53 = tpu.matmul %51, %52, %cst_26 {dimension_numbers = #tpu.dot_dimension_numbers<[1], [0], [0], [1], [0, 0, 1, 1], [], []>} : vector<16x32xf32>, vector<32x96xf32>, vector<16x96xf32> -> vector<16x96xf32>
    %c247 = arith.constant 247 : index
    %c0_27 = arith.constant 0 : index
    %54 = vector.load %arg3[%c247, %c0_27] : memref<256x128xf32, #tpu.memory_space<vmem>>, vector<1x96xf32>
    %55 = vector.broadcast %54 : vector<1x96xf32> to vector<16x96xf32>
    %56 = arith.addf %53, %55 : vector<16x96xf32>
    %57 = math.tanh %56 : vector<16x96xf32>
    %58 = vector.extract_strided_slice %57 {offsets = [0, 0], sizes = [16, 32], strides = [1, 1]} : vector<16x96xf32> to vector<16x32xf32>
    %cst_28 = arith.constant 5.000000e-01 : f32
    %59 = vector.broadcast %cst_28 : f32 to vector<16x32xf32>
    %60 = arith.mulf %59, %58 : vector<16x32xf32>
    %cst_29 = arith.constant 5.000000e-01 : f32
    %61 = vector.broadcast %cst_29 : f32 to vector<16x32xf32>
    %62 = arith.addf %60, %61 : vector<16x32xf32>
    %63 = vector.extract_strided_slice %57 {offsets = [0, 32], sizes = [16, 32], strides = [1, 1]} : vector<16x96xf32> to vector<16x32xf32>
    %64 = vector.extract_strided_slice %57 {offsets = [0, 64], sizes = [16, 32], strides = [1, 1]} : vector<16x96xf32> to vector<16x32xf32>
    %cst_30 = arith.constant 5.000000e-01 : f32
    %65 = vector.broadcast %cst_30 : f32 to vector<16x32xf32>
    %66 = arith.mulf %65, %64 : vector<16x32xf32>
    %cst_31 = arith.constant 5.000000e-01 : f32
    %67 = vector.broadcast %cst_31 : f32 to vector<16x32xf32>
    %68 = arith.addf %66, %67 : vector<16x32xf32>
    %69 = arith.mulf %62, %63 : vector<16x32xf32>
    %70 = math.tanh %69 : vector<16x32xf32>
    %71 = arith.mulf %68, %70 : vector<16x32xf32>
    %c96 = arith.constant 96 : index
    %c0_32 = arith.constant 0 : index
    %72 = vector.load %arg3[%c96, %c0_32] : memref<256x128xf32, #tpu.memory_space<vmem>>, vector<32x96xf32>
    %cst_33 = arith.constant dense<0.000000e+00> : vector<16x96xf32>
    %73 = tpu.matmul %71, %72, %cst_33 {dimension_numbers = #tpu.dot_dimension_numbers<[1], [0], [0], [1], [0, 0, 1, 1], [], []>} : vector<16x32xf32>, vector<32x96xf32>, vector<16x96xf32> -> vector<16x96xf32>
    %c248 = arith.constant 248 : index
    %c0_34 = arith.constant 0 : index
    %74 = vector.load %arg3[%c248, %c0_34] : memref<256x128xf32, #tpu.memory_space<vmem>>, vector<1x96xf32>
    %75 = vector.broadcast %74 : vector<1x96xf32> to vector<16x96xf32>
    %76 = arith.addf %73, %75 : vector<16x96xf32>
    %77 = math.tanh %76 : vector<16x96xf32>
    %78 = vector.extract_strided_slice %77 {offsets = [0, 0], sizes = [16, 32], strides = [1, 1]} : vector<16x96xf32> to vector<16x32xf32>
    %cst_35 = arith.constant 5.000000e-01 : f32
    %79 = vector.broadcast %cst_35 : f32 to vector<16x32xf32>
    %80 = arith.mulf %79, %78 : vector<16x32xf32>
    %cst_36 = arith.constant 5.000000e-01 : f32
    %81 = vector.broadcast %cst_36 : f32 to vector<16x32xf32>
    %82 = arith.addf %80, %81 : vector<16x32xf32>
    %83 = vector.extract_strided_slice %77 {offsets = [0, 32], sizes = [16, 32], strides = [1, 1]} : vector<16x96xf32> to vector<16x32xf32>
    %84 = vector.extract_strided_slice %77 {offsets = [0, 64], sizes = [16, 32], strides = [1, 1]} : vector<16x96xf32> to vector<16x32xf32>
    %cst_37 = arith.constant 5.000000e-01 : f32
    %85 = vector.broadcast %cst_37 : f32 to vector<16x32xf32>
    %86 = arith.mulf %85, %84 : vector<16x32xf32>
    %cst_38 = arith.constant 5.000000e-01 : f32
    %87 = vector.broadcast %cst_38 : f32 to vector<16x32xf32>
    %88 = arith.addf %86, %87 : vector<16x32xf32>
    %89 = arith.mulf %82, %83 : vector<16x32xf32>
    %90 = math.tanh %89 : vector<16x32xf32>
    %91 = arith.mulf %88, %90 : vector<16x32xf32>
    %c128 = arith.constant 128 : index
    %c0_39 = arith.constant 0 : index
    %92 = vector.load %arg3[%c128, %c0_39] : memref<256x128xf32, #tpu.memory_space<vmem>>, vector<32x96xf32>
    %cst_40 = arith.constant dense<0.000000e+00> : vector<16x96xf32>
    %93 = tpu.matmul %91, %92, %cst_40 {dimension_numbers = #tpu.dot_dimension_numbers<[1], [0], [0], [1], [0, 0, 1, 1], [], []>} : vector<16x32xf32>, vector<32x96xf32>, vector<16x96xf32> -> vector<16x96xf32>
    %c249 = arith.constant 249 : index
    %c0_41 = arith.constant 0 : index
    %94 = vector.load %arg3[%c249, %c0_41] : memref<256x128xf32, #tpu.memory_space<vmem>>, vector<1x96xf32>
    %95 = vector.broadcast %94 : vector<1x96xf32> to vector<16x96xf32>
    %96 = arith.addf %93, %95 : vector<16x96xf32>
    %97 = math.tanh %96 : vector<16x96xf32>
    %98 = vector.extract_strided_slice %97 {offsets = [0, 0], sizes = [16, 32], strides = [1, 1]} : vector<16x96xf32> to vector<16x32xf32>
    %cst_42 = arith.constant 5.000000e-01 : f32
    %99 = vector.broadcast %cst_42 : f32 to vector<16x32xf32>
    %100 = arith.mulf %99, %98 : vector<16x32xf32>
    %cst_43 = arith.constant 5.000000e-01 : f32
    %101 = vector.broadcast %cst_43 : f32 to vector<16x32xf32>
    %102 = arith.addf %100, %101 : vector<16x32xf32>
    %103 = vector.extract_strided_slice %97 {offsets = [0, 32], sizes = [16, 32], strides = [1, 1]} : vector<16x96xf32> to vector<16x32xf32>
    %104 = vector.extract_strided_slice %97 {offsets = [0, 64], sizes = [16, 32], strides = [1, 1]} : vector<16x96xf32> to vector<16x32xf32>
    %cst_44 = arith.constant 5.000000e-01 : f32
    %105 = vector.broadcast %cst_44 : f32 to vector<16x32xf32>
    %106 = arith.mulf %105, %104 : vector<16x32xf32>
    %cst_45 = arith.constant 5.000000e-01 : f32
    %107 = vector.broadcast %cst_45 : f32 to vector<16x32xf32>
    %108 = arith.addf %106, %107 : vector<16x32xf32>
    %109 = arith.mulf %102, %103 : vector<16x32xf32>
    %110 = math.tanh %109 : vector<16x32xf32>
    %111 = arith.mulf %108, %110 : vector<16x32xf32>
    %c160 = arith.constant 160 : index
    %c0_46 = arith.constant 0 : index
    %112 = vector.load %arg3[%c160, %c0_46] : memref<256x128xf32, #tpu.memory_space<vmem>>, vector<32x96xf32>
    %cst_47 = arith.constant dense<0.000000e+00> : vector<16x96xf32>
    %113 = tpu.matmul %111, %112, %cst_47 {dimension_numbers = #tpu.dot_dimension_numbers<[1], [0], [0], [1], [0, 0, 1, 1], [], []>} : vector<16x32xf32>, vector<32x96xf32>, vector<16x96xf32> -> vector<16x96xf32>
    %c250 = arith.constant 250 : index
    %c0_48 = arith.constant 0 : index
    %114 = vector.load %arg3[%c250, %c0_48] : memref<256x128xf32, #tpu.memory_space<vmem>>, vector<1x96xf32>
    %115 = vector.broadcast %114 : vector<1x96xf32> to vector<16x96xf32>
    %116 = arith.addf %113, %115 : vector<16x96xf32>
    %117 = math.tanh %116 : vector<16x96xf32>
    %118 = vector.extract_strided_slice %117 {offsets = [0, 0], sizes = [16, 32], strides = [1, 1]} : vector<16x96xf32> to vector<16x32xf32>
    %cst_49 = arith.constant 5.000000e-01 : f32
    %119 = vector.broadcast %cst_49 : f32 to vector<16x32xf32>
    %120 = arith.mulf %119, %118 : vector<16x32xf32>
    %cst_50 = arith.constant 5.000000e-01 : f32
    %121 = vector.broadcast %cst_50 : f32 to vector<16x32xf32>
    %122 = arith.addf %120, %121 : vector<16x32xf32>
    %123 = vector.extract_strided_slice %117 {offsets = [0, 32], sizes = [16, 32], strides = [1, 1]} : vector<16x96xf32> to vector<16x32xf32>
    %124 = vector.extract_strided_slice %117 {offsets = [0, 64], sizes = [16, 32], strides = [1, 1]} : vector<16x96xf32> to vector<16x32xf32>
    %cst_51 = arith.constant 5.000000e-01 : f32
    %125 = vector.broadcast %cst_51 : f32 to vector<16x32xf32>
    %126 = arith.mulf %125, %124 : vector<16x32xf32>
    %cst_52 = arith.constant 5.000000e-01 : f32
    %127 = vector.broadcast %cst_52 : f32 to vector<16x32xf32>
    %128 = arith.addf %126, %127 : vector<16x32xf32>
    %129 = arith.mulf %122, %123 : vector<16x32xf32>
    %130 = math.tanh %129 : vector<16x32xf32>
    %131 = arith.mulf %128, %130 : vector<16x32xf32>
    %c192 = arith.constant 192 : index
    %c0_53 = arith.constant 0 : index
    %132 = vector.load %arg3[%c192, %c0_53] : memref<256x128xf32, #tpu.memory_space<vmem>>, vector<32x16xf32>
    %cst_54 = arith.constant dense<0.000000e+00> : vector<16x16xf32>
    %133 = tpu.matmul %131, %132, %cst_54 {dimension_numbers = #tpu.dot_dimension_numbers<[1], [0], [0], [1], [0, 0, 1, 1], [], []>} : vector<16x32xf32>, vector<32x16xf32>, vector<16x16xf32> -> vector<16x16xf32>
    %c245 = arith.constant 245 : index
    %c0_55 = arith.constant 0 : index
    %134 = vector.load %arg3[%c245, %c0_55] : memref<256x128xf32, #tpu.memory_space<vmem>>, vector<1x16xf32>
    %135 = vector.broadcast %134 : vector<1x16xf32> to vector<16x16xf32>
    %136 = arith.addf %133, %135 : vector<16x16xf32>
    %cst_56 = arith.constant 0.000000e+00 : f32
    %137 = vector.broadcast %cst_56 : f32 to vector<16x16xf32>
    %138 = arith.maximumf %136, %137 : vector<16x16xf32>
    %c224 = arith.constant 224 : index
    %c0_57 = arith.constant 0 : index
    %139 = vector.load %arg3[%c224, %c0_57] : memref<256x128xf32, #tpu.memory_space<vmem>>, vector<16x128xf32>
    %cst_58 = arith.constant dense<0.000000e+00> : vector<16x128xf32>
    %140 = tpu.matmul %138, %139, %cst_58 {dimension_numbers = #tpu.dot_dimension_numbers<[1], [0], [0], [1], [0, 0, 1, 1], [], []>} : vector<16x16xf32>, vector<16x128xf32>, vector<16x128xf32> -> vector<16x128xf32>
    %c246 = arith.constant 246 : index
    %c0_59 = arith.constant 0 : index
    %141 = vector.load %arg3[%c246, %c0_59] : memref<256x128xf32, #tpu.memory_space<vmem>>, vector<1x128xf32>
    %142 = vector.broadcast %141 : vector<1x128xf32> to vector<16x128xf32>
    %143 = arith.addf %140, %142 : vector<16x128xf32>
    %cst_60 = arith.constant dense<0xFF800000> : vector<16xf32>
    %144 = vector.multi_reduction <maximumf>, %143, %cst_60 [1] : vector<16x128xf32> to vector<16xf32>
    %145 = vector.shape_cast %144 : vector<16xf32> to vector<16x1xf32>
    %146 = vector.broadcast %145 : vector<16x1xf32> to vector<16x128xf32>
    %147 = arith.subf %143, %146 : vector<16x128xf32>
    %148 = math.exp %147 : vector<16x128xf32>
    %cst_61 = arith.constant dense<0.000000e+00> : vector<16xf32>
    %149 = vector.multi_reduction <add>, %148, %cst_61 [1] : vector<16x128xf32> to vector<16xf32>
    %150 = vector.shape_cast %149 : vector<16xf32> to vector<16x1xf32>
    %151 = math.log %150 : vector<16x1xf32>
    %152 = arith.addf %151, %145 : vector<16x1xf32>
    %153 = vector.broadcast %152 : vector<16x1xf32> to vector<16x128xf32>
    %154 = arith.subf %143, %153 : vector<16x128xf32>
    %c0_62 = arith.constant 0 : index
    %c0_63 = arith.constant 0 : index
    %c0_64 = arith.constant 0 : index
    %155 = vector.load %arg4[%c0_62, %c0_63, %c0_64] : memref<1x16x128xf32, #tpu.memory_space<vmem>>, vector<1x16x128xf32>
    %156 = vector.shape_cast %155 : vector<1x16x128xf32> to vector<16x128xf32>
    %157 = vector.shape_cast %154 : vector<16x128xf32> to vector<1x16x128xf32>
    tpu.vector_store %arg4[%c0_62, %c0_63, %c0_64], %157 {strides = array<i32>} : memref<1x16x128xf32, #tpu.memory_space<vmem>>, vector<1x16x128xf32>,
    return
  }
  func.func @transform_0(%arg0: i32) -> (i32, i32, i32) {
    %c0_i32 = arith.constant 0 : i32
    %c0_i32_0 = arith.constant 0 : i32
    %c0_i32_1 = arith.constant 0 : i32
    return %arg0, %c0_i32, %c0_i32_0 : i32, i32, i32
  }
  func.func @transform_1(%arg0: i32) -> (i32, i32, i32) {
    %c0_i32 = arith.constant 0 : i32
    %c0_i32_0 = arith.constant 0 : i32
    %c0_i32_1 = arith.constant 0 : i32
    return %arg0, %c0_i32, %c0_i32_0 : i32, i32, i32
  }
  func.func @transform_2(%arg0: i32) -> (i32, i32) {
    %c0_i32 = arith.constant 0 : i32
    %c0_i32_0 = arith.constant 0 : i32
    %c0_i32_1 = arith.constant 0 : i32
    return %c0_i32, %c0_i32_0 : i32, i32
  }
  func.func @transform_3(%arg0: i32) -> (i32, i32, i32) {
    %c0_i32 = arith.constant 0 : i32
    %c0_i32_0 = arith.constant 0 : i32
    %c0_i32_1 = arith.constant 0 : i32
    return %arg0, %c0_i32, %c0_i32_0 : i32, i32, i32
  }
}

</mosaic_0001>

<llo_original>
// kernel: lstm_gdc_forward.1
$region0: #{lstm_gdc_forward.1}
  #allocation0 [shape = 'u32[]', space=smem, size = 0x4, offset = 0x4, fixed_abs, tag = 'smem constant byte address 0x4 - core index']
  #allocation1 [shape = 'u32[144,128]{1,0:T(1,128)}', space=vmem, size = 0x12000, scoped, tag = 'internal scratch']
  %s0 = inlined_call_operand.hbm [shape: f32[8,16,32], index: 0, kind: input, shape index: {}]
  %s1 = inlined_call_operand.hbm [shape: f32[8,16,16], index: 1, kind: input, shape index: {}]
  %s2 = inlined_call_operand.hbm [shape: f32[256,128], index: 2, kind: input, shape index: {}]
  %s3 = inlined_call_operand.hbm [shape: f32[8,16,128], index: 3, kind: output, shape index: {}]
  %s4 = sld [smem:[#allocation0]]
  $region57: #{lstm_gdc_forward.1} parent=0
    _
  %s6 = ssub.s32 1, %s4
  %s7 = scalar_select 0, %s6, %s4
  $region1: #{lstm_gdc_forward.1} parent=0
    #allocation2 [shape = 'u8[16384]{0}', space=vmem, size = 0x4000, scoped, tag = 'input window, operand 0']
    #allocation3 [shape = 's32[2]{0}', space=sflag, size = 0x8, scoped, tag = 'scoped memory for lstm_gdc_forward.1']
    #allocation4 [shape = 's32[2]{0}', space=sflag, size = 0x8, scoped, tag = 'scoped memory for lstm_gdc_forward.1']
    #allocation5 [shape = 'u8[16384]{0}', space=vmem, size = 0x4000, scoped, tag = 'input window, operand 1']
    #allocation6 [shape = 's32[2]{0}', space=sflag, size = 0x8, scoped, tag = 'scoped memory for lstm_gdc_forward.1']
    #allocation7 [shape = 'u8[131072]{0}', space=vmem, size = 0x20000, scoped, tag = 'input window, operand 2, single buffered']
    #allocation8 [shape = 'u8[16384]{0}', space=vmem, size = 0x4000, scoped, tag = 'output window, operand 0']
    %8 = vsyncpa [#allocation3], 0
    %s9 = scalar_lea.sflag [#allocation3], 1
    %10 = vsyncpa %s9, 0
    %11 = vsyncpa [#allocation6], 0
    %s12 = scalar_lea.sflag [#allocation6], 1
    %13 = vsyncpa %s12, 0
    %14 = vsyncpa [#allocation4], 0
    %s15 = scalar_lea.sflag [#allocation4], 1
    %16 = vsyncpa %s15, 0
    loop: start=0, step=1, limit=10
    $region2: #{lstm_gdc_forward.1} parent=1 // loop_pre_header
      _
    $region3: #{lstm_gdc_forward.1} parent=1 // loop_header
      %s18 = sphi 0, %s22
      %p19 = scmp.ge.s32.totalorder %s18, 10
      %s28 = sphi 0, %s30
      %s31 = sphi 0, %s28
      %s32 = sphi 0, %s31
      %s48 = sphi 0, %s32
      %s54 = sphi 0, %s56
      %s57 = sphi 0, %s54
      %s58 = sphi 0, %s57
      %s74 = sphi 0, %s58
      %s78 = sphi 0, %s78
      %s80 = sphi 0, %s78
      %s81 = sphi 0, %s80
      %s95 = sphi 0, %s81
      %s101 = sphi 0, %s103
      %s104 = sphi 0, %s101
      %s105 = sphi 0, %s104
      %s121 = sphi 0, %s105
    $region4: #{lstm_gdc_forward.1} parent=1 // loop_header_branch
      %21 = sbr.rel (%p19) target = $region8
    $region5: #{lstm_gdc_forward.1} parent=1 // loop_body
      %s23 = ssub.s32 %s18, 1
      %s24 = ssub.s32 %s18, 2
      %s25 = sadd.s32 %s18, 1
      %s26 = ssub.s32 %s18, %s25
      %p27 = scmp.eq.s32.totalorder %s26, 0
      %s29 = sadd.s32 %s28, 1
      %s30 = scalar_select %p27, %s28, %s29
      %p33 = pneg %p27
      %p34 = scmp.eq.s32.totalorder %s18, 7
      %p35 = por %p33, %p34
      %p36 = scmp.ne.s32.totalorder %s28, %s31
      %p37 = scmp.eq.s32.totalorder %s18, 0
      %p38 = por %p36, %p37
      %p39 = scmp.ne.s32.totalorder %s28, %s31
      %p40 = scmp.eq.s32.totalorder %s23, 7
      %p41 = por %p39, %p40
      %p42 = scmp.ne.s32.totalorder %s31, %s32
      %p43 = scmp.eq.s32.totalorder %s23, 0
      %p44 = por %p42, %p43
      %p45 = scmp.ne.s32.totalorder %s31, %s32
      %p46 = scmp.eq.s32.totalorder %s24, 7
      %p47 = por %p45, %p46
      %p49 = scmp.ne.s32.totalorder %s32, %s48
      %p50 = scmp.eq.s32.totalorder %s24, 0
      %p51 = por %p49, %p50
      %s52 = ssub.s32 %s18, %s25
      %p53 = scmp.eq.s32.totalorder %s52, 0
      %s55 = sadd.s32 %s54, 1
      %s56 = scalar_select %p53, %s54, %s55
      %p59 = pneg %p53
      %p60 = scmp.eq.s32.totalorder %s18, 7
      %p61 = por %p59, %p60
      %p62 = scmp.ne.s32.totalorder %s54, %s57
      %p63 = scmp.eq.s32.totalorder %s18, 0
      %p64 = por %p62, %p63
      %p65 = scmp.ne.s32.totalorder %s54, %s57
      %p66 = scmp.eq.s32.totalorder %s23, 7
      %p67 = por %p65, %p66
      %p68 = scmp.ne.s32.totalorder %s57, %s58
      %p69 = scmp.eq.s32.totalorder %s23, 0
      %p70 = por %p68, %p69
      %p71 = scmp.ne.s32.totalorder %s57, %s58
      %p72 = scmp.eq.s32.totalorder %s24, 7
      %p73 = por %p71, %p72
      %p75 = scmp.ne.s32.totalorder %s58, %s74
      %p76 = scmp.eq.s32.totalorder %s24, 0
      %p77 = por %p75, %p76
      %s79 = sadd.s32 %s78, 1
      %p82 = scmp.eq.s32.totalorder %s18, 7
      %p83 = scmp.ne.s32.totalorder %s78, %s80
      %p84 = scmp.eq.s32.totalorder %s18, 0
      %p85 = por %p83, %p84
      %p86 = scmp.ne.s32.totalorder %s78, %s80
      %p87 = scmp.eq.s32.totalorder %s23, 7
      %p88 = por %p86, %p87
      %p89 = scmp.ne.s32.totalorder %s80, %s81
      %p90 = scmp.eq.s32.totalorder %s23, 0
      %p91 = por %p89, %p90
      %p92 = scmp.ne.s32.totalorder %s80, %s81
      %p93 = scmp.eq.s32.totalorder %s24, 7
      %p94 = por %p92, %p93
      %p96 = scmp.ne.s32.totalorder %s81, %s95
      %p97 = scmp.eq.s32.totalorder %s24, 0
      %p98 = por %p96, %p97
      %s99 = ssub.s32 %s18, %s25
      %p100 = scmp.eq.s32.totalorder %s99, 0
      %s102 = sadd.s32 %s101, 1
      %s103 = scalar_select %p100, %s101, %s102
      %p106 = pneg %p100
      %p107 = scmp.eq.s32.totalorder %s18, 7
      %p108 = por %p106, %p107
      %p109 = scmp.ne.s32.totalorder %s101, %s104
      %p110 = scmp.eq.s32.totalorder %s18, 0
      %p111 = por %p109, %p110
      %p112 = scmp.ne.s32.totalorder %s101, %s104
      %p113 = scmp.eq.s32.totalorder %s23, 7
      %p114 = por %p112, %p113
      %p115 = scmp.ne.s32.totalorder %s104, %s105
      %p116 = scmp.eq.s32.totalorder %s23, 0
      %p117 = por %p115, %p116
      %p118 = scmp.ne.s32.totalorder %s104, %s105
      %p119 = scmp.eq.s32.totalorder %s24, 7
      %p120 = por %p118, %p119
      %p122 = scmp.ne.s32.totalorder %s105, %s121
      %p123 = scmp.eq.s32.totalorder %s24, 0
      %p124 = por %p122, %p123
      %p125 = scmp.le.s32.totalorder 1, %s18
      %p126 = scmp.lt.s32.totalorder %s18, 9
      %p127 = pnand %p125, %p126
      %p128 = pneg %p127
      // Predicated region
      $region9: #{lstm_gdc_forward.1} parent=5 // pred_check
        _
      $region10: #{lstm_gdc_forward.1} parent=5 // pred_check_branch
        %130 = sbr.rel (%p127) target = $region12
      $region11: #{lstm_gdc_forward.1} parent=5 // pred_region
        %s131 = ssub.s32 %s18, 1
        // Predicated region
        $region13: #{lstm_gdc_forward.1} parent=11 // pred_check
          %p132 = pneg %p91
        $region14: #{lstm_gdc_forward.1} parent=11 // pred_check_branch
          %134 = sbr.rel (%p132) target = $region16
        $region15: #{lstm_gdc_forward.1} parent=11 // pred_region
          %s136 = ssub.s32 4096, 4096
          %137 = vsyncadd [#allocation6], %s136
          %s138 = sshll.u32 [#allocation7], 4
          %s139 = int_to_ptr.vmem [resolvable:$true] %s138
          %144 = dma.hbm_to_vmem [thread:$0]  %s2, 4096, %s139, [#allocation6], 128, 128, 8
        $region16: #{lstm_gdc_forward.1} parent=11 // pred_fallthru
          _
      $region12: #{lstm_gdc_forward.1} parent=5 // pred_fallthru
        _
      %p145 = scmp.lt.s32.totalorder %s18, 8
      // Predicated region
      $region17: #{lstm_gdc_forward.1} parent=5 // pred_check
        %p146 = pneg %p145
      $region18: #{lstm_gdc_forward.1} parent=5 // pred_check_branch
        %148 = sbr.rel (%p146) target = $region20
      $region19: #{lstm_gdc_forward.1} parent=5 // pred_region
        // Predicated region
        $region21: #{lstm_gdc_forward.1} parent=19 // pred_check
          %p149 = pneg %p38
        $region22: #{lstm_gdc_forward.1} parent=19 // pred_check_branch
          %151 = sbr.rel (%p149) target = $region24
        $region23: #{lstm_gdc_forward.1} parent=19 // pred_region
          %s152 = sand.u32 %s28, 1
          %s153 = scalar_lea.sflag [#allocation3], %s152
          %s154 = sand.u32 %s28, 1
          %s155 = smul.addr %s154, 16
          %s156 = scalar_lea.vmem [#allocation2], %s155
          %s158 = ssub.s32 256, 256
          %159 = vsyncadd %s153, %s158
          %s160 = smul.addr %s18, 2
          %s161 = smul.addr %s160, 128
          %s162 = scalar_lea.hbm %s0, %s161
          %s163 = sshll.u32 %s156, 4
          %s164 = int_to_ptr.vmem [resolvable:$true] %s163
          %169 = dma.hbm_to_vmem [thread:$0]  %s162, 256, %s164, %s153, 128, 128, 8
        $region24: #{lstm_gdc_forward.1} parent=19 // pred_fallthru
          _
        // Predicated region
        $region25: #{lstm_gdc_forward.1} parent=19 // pred_check
          %p170 = pneg %p64
        $region26: #{lstm_gdc_forward.1} parent=19 // pred_check_branch
          %172 = sbr.rel (%p170) target = $region28
        $region27: #{lstm_gdc_forward.1} parent=19 // pred_region
          %s173 = sand.u32 %s18, 1
          %s174 = scalar_lea.sflag [#allocation6], %s173
          %s175 = sand.u32 %s54, 1
          %s176 = smul.addr %s175, 16
          %s177 = scalar_lea.vmem [#allocation5], %s176
          %s179 = ssub.s32 256, 256
          %180 = vsyncadd %s174, %s179
          %s181 = smul.addr %s18, 2
          %s182 = smul.addr %s181, 128
          %s183 = scalar_lea.hbm %s1, %s182
          %s184 = sshll.u32 %s177, 4
          %s185 = int_to_ptr.vmem [resolvable:$true] %s184
          %190 = dma.hbm_to_vmem [thread:$0]  %s183, 256, %s185, %s174, 128, 128, 8
        $region28: #{lstm_gdc_forward.1} parent=19 // pred_fallthru
          _
      $region20: #{lstm_gdc_forward.1} parent=5 // pred_fallthru
        _
      %p191 = scmp.le.s32.totalorder 1, %s18
      %p192 = scmp.lt.s32.totalorder %s18, 9
      %p193 = pnand %p191, %p192
      %p194 = pneg %p193
      // Predicated region
      $region29: #{lstm_gdc_forward.1} parent=5 // pred_check
        _
      $region30: #{lstm_gdc_forward.1} parent=5 // pred_check_branch
        %196 = sbr.rel (%p193) target = $region32
      $region31: #{lstm_gdc_forward.1} parent=5 // pred_region
        %s197 = ssub.s32 %s18, 1
        %s198 = sand.u32 %s31, 1
        %s199 = scalar_lea.sflag [#allocation3], %s198
        %s200 = sand.u32 %s31, 1
        %s201 = smul.addr %s200, 16
        %s202 = scalar_lea.vmem [#allocation2], %s201
        // Predicated region
        $region33: #{lstm_gdc_forward.1} parent=31 // pred_check
          %p203 = pneg %p44
        $region34: #{lstm_gdc_forward.1} parent=31 // pred_check_branch
          %205 = sbr.rel (%p203) target = $region36
        $region35: #{lstm_gdc_forward.1} parent=31 // pred_region
          %206 = dma.done %s199, 256
        $region36: #{lstm_gdc_forward.1} parent=31 // pred_fallthru
          _
        %s207 = sand.u32 %s23, 1
        %s208 = scalar_lea.sflag [#allocation6], %s207
        %s209 = sand.u32 %s57, 1
        %s210 = smul.addr %s209, 16
        %s211 = scalar_lea.vmem [#allocation5], %s210
        // Predicated region
        $region37: #{lstm_gdc_forward.1} parent=31 // pred_check
          %p212 = pneg %p70
        $region38: #{lstm_gdc_forward.1} parent=31 // pred_check_branch
          %214 = sbr.rel (%p212) target = $region40
        $region39: #{lstm_gdc_forward.1} parent=31 // pred_region
          %215 = dma.done %s208, 256
        $region40: #{lstm_gdc_forward.1} parent=31 // pred_fallthru
          _
        // Predicated region
        $region41: #{lstm_gdc_forward.1} parent=31 // pred_check
          %p216 = pneg %p91
        $region42: #{lstm_gdc_forward.1} parent=31 // pred_check_branch
          %218 = sbr.rel (%p216) target = $region44
        $region43: #{lstm_gdc_forward.1} parent=31 // pred_region
          %219 = dma.done [#allocation6], 4096
        $region44: #{lstm_gdc_forward.1} parent=31 // pred_fallthru
          _
        %s220 = sand.u32 %s31, 1
        %s221 = scalar_lea.sflag [#allocation3], %s220
        %s222 = sand.u32 %s31, 1
        %s223 = smul.addr %s222, 16
        %s224 = scalar_lea.vmem [#allocation2], %s223
        %p225 = pneg %p44
        %p226 = pneg %p41
        %s227 = sand.u32 %s23, 1
        %s228 = scalar_lea.sflag [#allocation6], %s227
        %s229 = sand.u32 %s57, 1
        %s230 = smul.addr %s229, 16
        %s231 = scalar_lea.vmem [#allocation5], %s230
        %p232 = pneg %p70
        %p233 = pneg %p67
        %p234 = pneg %p91
        %p235 = pneg %p88
        %p236 = pneg %p117
        %p237 = pneg %p114
        %s238 = sand.u32 %s104, 1
        %s239 = scalar_lea.sflag [#allocation4], %s238
        %s240 = sand.u32 %s104, 1
        %s241 = smul.addr %s240, 16
        %s242 = scalar_lea.vmem [#allocation8], %s241
        %v243 = vld [vmem:[%s202] sm:$0xff]
        %v244 = vld [vmem:[%s202 + $0x8] sm:$0xff]
        %v245 = vld [vmem:[%s211] sm:$0xff]
        %v246 = vld [vmem:[%s211 + $0x8] sm:$0xff]
        %v247 = vld [vmem:[#allocation7] sm:$0xff]
        %v248 = vld [vmem:[#allocation7 + $0x8] sm:$0xff]
        %v249 = vld [vmem:[#allocation7 + $0x10] sm:$0xff]
        %v250 = vld [vmem:[#allocation7 + $0x18] sm:$0xff]
        %v251 = vld [vmem:[#allocation7 + $0xf0] sm:$0x1]
        %v252 = vlaneseq
        %v253 = vshrl.u32 %v252, 7
        %v254 = vsub.s32 0, %v253
        %v255 = vrot.slane %v251, %v254
        %vm256 = vcmask 261120
        %v258 = vsel %vm256, %v243, 0
        %v261 = vsel %vm256, %v244, 0
        %263 = vmatprep.subr.mxu0 0.0
        %264 = vmatpush1.msra.mxu0 %v247
        %265 = vmatprep.subr.mxu0 0.0
        %266 = vmatpush1.msra.mxu0 %v248
        %267 = vmatprep.subr.mxu0 0.0
        %268 = vmatpush1.msra.mxu0 %v249
        %269 = vmatprep.subr.mxu0 0.0
        %270 = vmatpush1.msra.mxu0 %v250
        %271 = vmatprep.subr.mxu0 0.0
        %272 = vmatpush1.msra.mxu0 0.0
        %273 = vmatprep.subr.mxu0 0.0
        %274 = vmatpush1.msra.mxu0 0.0
        %275 = vmatprep.subr.mxu0 0.0
        %276 = vmatpush1.msra.mxu0 0.0
        %277 = vmatprep.subr.mxu0 0.0
        %278 = vmatpush1.msra.mxu0 0.0
        %279 = vmatprep.subr.mxu0 0.0
        %280 = vmatpush1.msra.mxu0 0.0
        %281 = vmatprep.subr.mxu0 0.0
        %282 = vmatpush1.msra.mxu0 0.0
        %283 = vmatprep.subr.mxu0 0.0
        %284 = vmatpush1.msra.mxu0 0.0
        %285 = vmatprep.subr.mxu0 0.0
        %286 = vmatpush1.msra.mxu0 0.0
        %287 = vmatprep.subr.mxu0 0.0
        %288 = vmatpush1.msra.mxu0 0.0
        %289 = vmatprep.subr.mxu0 0.0
        %290 = vmatpush1.msra.mxu0 0.0
        %291 = vmatprep.subr.mxu0 0.0
        %292 = vmatpush1.msra.mxu0 0.0
        %293 = vmatprep.subr.mxu0 0.0
        %294 = vmatpush1.msra.mxu0 0.0
        %295 = vmatprep.subr.mxu0 0.0
        %296 = vmatpush1.msra.mxu0 0.0
        %297 = vmatprep.subr.mxu0 0.0
        %298 = vmatpush1.msra.mxu0 0.0
        %299 = vmatprep.subr.mxu0 0.0
        %300 = vmatpush1.msra.mxu0 0.0
        %301 = vmatprep.subr.mxu0 0.0
        %302 = vmatpush1.msra.mxu0 0.0
        %303 = vmatprep.subr.mxu0 0.0
        %304 = vmatpush1.msra.mxu0 0.0
        %305 = vmatprep.subr.mxu0 0.0
        %306 = vmatpush1.msra.mxu0 0.0
        %307 = vmatprep.subr.mxu0 0.0
        %308 = vmatpush1.msra.mxu0 0.0
        %309 = vmatprep.subr.mxu0 0.0
        %310 = vmatpush1.msra.mxu0 0.0
        %311 = vmatprep.subr.mxu0 0.0
        %312 = vmatpush1.msra.mxu0 0.0
        %313 = vmatprep.subr.mxu0 0.0
        %314 = vmatpush1.msra.mxu0 0.0
        %315 = vmatprep.subr.mxu0 0.0
        %316 = vmatpush1.msra.mxu0 0.0
        %317 = vmatprep.subr.mxu0 0.0
        %318 = vmatpush1.msra.mxu0 0.0
        %319 = vmatprep.subr.mxu0 0.0
        %320 = vmatpush1.msra.mxu0 0.0
        %321 = vmatprep.subr.mxu0 0.0
        %322 = vmatpush1.msra.mxu0 0.0
        %323 = vmatprep.subr.mxu0 0.0
        %324 = vmatpush1.msra.mxu0 0.0
        %325 = vmatprep.subr.mxu0 0.0
        %326 = vmatpush1.msra.mxu0 0.0
        %327 = vmatprep.mubr.f32.mxu0 0.0
        %328 = vmatmul.mubr.f32.gmra.mrb[0].mxu0 %v258
        %v329 = vpop.f32.mrb[0].mxu0
        %v330 = vadd.f32 %v255, %v329
        %v331 = vpop.f32.mrb[0].mxu0
        %332 = vmatprep.mubr.f32.mxu0 0.0
        %333 = vmatmul.mubr.f32.gmra.mrb[0].mxu0 %v261
        %v334 = vpop.f32.mrb[0].mxu0
        %v335 = vadd.f32 %v255, %v334
        %v336 = vpop.f32.mrb[0].mxu0
        %337 = vdwg.mxu0
        %v338 = vld [vmem:[#allocation7 + $0xf1] sm:$0x1]
        %v339 = vlaneseq
        %v340 = vshrl.u32 %v339, 7
        %v341 = vsub.s32 0, %v340
        %v342 = vrot.slane %v338, %v341
        %vm343 = vcmask 130048
        %v345 = vsel %vm343, %v245, 0
        %v348 = vsel %vm343, %v246, 0
        %350 = vmatprep.subr.mxu0 0.0
        %351 = vmatpush1.msra.mxu0 %v330
        %352 = vmatprep.subr.mxu0 0.0
        %353 = vmatpush1.msra.mxu0 %v335
        %354 = vmatprep.subr.mxu0 0.0
        %355 = vmatpush1.msra.mxu0 0.0
        %356 = vmatprep.subr.mxu0 0.0
        %357 = vmatpush1.msra.mxu0 0.0
        %358 = vmatprep.subr.mxu0 0.0
        %359 = vmatpush1.msra.mxu0 0.0
        %360 = vmatprep.subr.mxu0 0.0
        %361 = vmatpush1.msra.mxu0 0.0
        %362 = vmatprep.subr.mxu0 0.0
        %363 = vmatpush1.msra.mxu0 0.0
        %364 = vmatprep.subr.mxu0 0.0
        %365 = vmatpush1.msra.mxu0 0.0
        %366 = vmatprep.subr.mxu0 0.0
        %367 = vmatpush1.msra.mxu0 0.0
        %368 = vmatprep.subr.mxu0 0.0
        %369 = vmatpush1.msra.mxu0 0.0
        %370 = vmatprep.subr.mxu0 0.0
        %371 = vmatpush1.msra.mxu0 0.0
        %372 = vmatprep.subr.mxu0 0.0
        %373 = vmatpush1.msra.mxu0 0.0
        %374 = vmatprep.subr.mxu0 0.0
        %375 = vmatpush1.msra.mxu0 0.0
        %376 = vmatprep.subr.mxu0 0.0
        %377 = vmatpush1.msra.mxu0 0.0
        %378 = vmatprep.subr.mxu0 0.0
        %379 = vmatpush1.msra.mxu0 0.0
        %380 = vmatprep.subr.mxu0 0.0
        %381 = vmatpush1.msra.mxu0 0.0
        %382 = vmatprep.subr.mxu0 0.0
        %383 = vmatpush1.msra.mxu0 0.0
        %384 = vmatprep.subr.mxu0 0.0
        %385 = vmatpush1.msra.mxu0 0.0
        %386 = vmatprep.subr.mxu0 0.0
        %387 = vmatpush1.msra.mxu0 0.0
        %388 = vmatprep.subr.mxu0 0.0
        %389 = vmatpush1.msra.mxu0 0.0
        %390 = vmatprep.subr.mxu0 0.0
        %391 = vmatpush1.msra.mxu0 0.0
        %392 = vmatprep.subr.mxu0 0.0
        %393 = vmatpush1.msra.mxu0 0.0
        %394 = vmatprep.subr.mxu0 0.0
        %395 = vmatpush1.msra.mxu0 0.0
        %396 = vmatprep.subr.mxu0 0.0
        %397 = vmatpush1.msra.mxu0 0.0
        %398 = vmatprep.subr.mxu0 0.0
        %399 = vmatpush1.msra.mxu0 0.0
        %400 = vmatprep.subr.mxu0 0.0
        %401 = vmatpush1.msra.mxu0 0.0
        %402 = vmatprep.subr.mxu0 0.0
        %403 = vmatpush1.msra.mxu0 0.0
        %404 = vmatprep.subr.mxu0 0.0
        %405 = vmatpush1.msra.mxu0 0.0
        %406 = vmatprep.subr.mxu0 0.0
        %407 = vmatpush1.msra.mxu0 0.0
        %408 = vmatprep.subr.mxu0 0.0
        %409 = vmatpush1.msra.mxu0 0.0
        %410 = vmatprep.subr.mxu0 0.0
        %411 = vmatpush1.msra.mxu0 0.0
        %412 = vmatprep.subr.mxu0 0.0
        %413 = vmatpush1.msra.mxu0 0.0
        %414 = vmatprep.mubr.f32.mxu0 0.0
        %415 = vmatmul.mubr.f32.gmra.mrb[0].mxu0 %v345
        %v416 = vpop.f32.mrb[0].mxu0
        %v417 = vadd.f32 %v342, %v416
        %v418 = vpop.f32.mrb[0].mxu0
        %419 = vmatprep.mubr.f32.mxu0 0.0
        %420 = vmatmul.mubr.f32.gmra.mrb[0].mxu0 %v348
        %v421 = vpop.f32.mrb[0].mxu0
        %v422 = vadd.f32 %v342, %v421
        %v423 = vpop.f32.mrb[0].mxu0
        %424 = vdwg.mxu0
        %v425 = vmax.f32 %v417, 0.0
        %v426 = vmax.f32 %v422, 0.0
        %v427 = vld [vmem:[#allocation7 + $0x20] sm:$0xff]
        %v428 = vld [vmem:[#allocation7 + $0x28] sm:$0xff]
        %v429 = vld [vmem:[#allocation7 + $0x30] sm:$0xff]
        %v430 = vld [vmem:[#allocation7 + $0x38] sm:$0xff]
        %v432 = vsel %vm256, %v425, 0
        %v435 = vsel %vm256, %v426, 0
        %437 = vmatprep.subr.mxu0 0.0
        %438 = vmatpush1.msra.mxu0 %v427
        %439 = vmatprep.subr.mxu0 0.0
        %440 = vmatpush1.msra.mxu0 %v428
        %441 = vmatprep.subr.mxu0 0.0
        %442 = vmatpush1.msra.mxu0 %v429
        %443 = vmatprep.subr.mxu0 0.0
        %444 = vmatpush1.msra.mxu0 %v430
        %445 = vmatprep.subr.mxu0 0.0
        %446 = vmatpush1.msra.mxu0 0.0
        %447 = vmatprep.subr.mxu0 0.0
        %448 = vmatpush1.msra.mxu0 0.0
        %449 = vmatprep.subr.mxu0 0.0
        %450 = vmatpush1.msra.mxu0 0.0
        %451 = vmatprep.subr.mxu0 0.0
        %452 = vmatpush1.msra.mxu0 0.0
        %453 = vmatprep.subr.mxu0 0.0
        %454 = vmatpush1.msra.mxu0 0.0
        %455 = vmatprep.subr.mxu0 0.0
        %456 = vmatpush1.msra.mxu0 0.0
        %457 = vmatprep.subr.mxu0 0.0
        %458 = vmatpush1.msra.mxu0 0.0
        %459 = vmatprep.subr.mxu0 0.0
        %460 = vmatpush1.msra.mxu0 0.0
        %461 = vmatprep.subr.mxu0 0.0
        %462 = vmatpush1.msra.mxu0 0.0
        %463 = vmatprep.subr.mxu0 0.0
        %464 = vmatpush1.msra.mxu0 0.0
        %465 = vmatprep.subr.mxu0 0.0
        %466 = vmatpush1.msra.mxu0 0.0
        %467 = vmatprep.subr.mxu0 0.0
        %468 = vmatpush1.msra.mxu0 0.0
        %469 = vmatprep.subr.mxu0 0.0
        %470 = vmatpush1.msra.mxu0 0.0
        %471 = vmatprep.subr.mxu0 0.0
        %472 = vmatpush1.msra.mxu0 0.0
        %473 = vmatprep.subr.mxu0 0.0
        %474 = vmatpush1.msra.mxu0 0.0
        %475 = vmatprep.subr.mxu0 0.0
        %476 = vmatpush1.msra.mxu0 0.0
        %477 = vmatprep.subr.mxu0 0.0
        %478 = vmatpush1.msra.mxu0 0.0
        %479 = vmatprep.subr.mxu0 0.0
        %480 = vmatpush1.msra.mxu0 0.0
        %481 = vmatprep.subr.mxu0 0.0
        %482 = vmatpush1.msra.mxu0 0.0
        %483 = vmatprep.subr.mxu0 0.0
        %484 = vmatpush1.msra.mxu0 0.0
        %485 = vmatprep.subr.mxu0 0.0
        %486 = vmatpush1.msra.mxu0 0.0
        %487 = vmatprep.subr.mxu0 0.0
        %488 = vmatpush1.msra.mxu0 0.0
        %489 = vmatprep.subr.mxu0 0.0
        %490 = vmatpush1.msra.mxu0 0.0
        %491 = vmatprep.subr.mxu0 0.0
        %492 = vmatpush1.msra.mxu0 0.0
        %493 = vmatprep.subr.mxu0 0.0
        %494 = vmatpush1.msra.mxu0 0.0
        %495 = vmatprep.subr.mxu0 0.0
        %496 = vmatpush1.msra.mxu0 0.0
        %497 = vmatprep.subr.mxu0 0.0
        %498 = vmatpush1.msra.mxu0 0.0
        %499 = vmatprep.subr.mxu0 0.0
        %500 = vmatpush1.msra.mxu0 0.0
        %501 = vmatprep.mubr.f32.mxu0 0.0
        %502 = vmatmul.mubr.f32.gmra.mrb[0].mxu0 %v432
        %v503 = vpop.f32.mrb[0].mxu0
        %v504 = vadd.f32 0.0, %v503
        %v505 = vpop.f32.mrb[0].mxu0
        %506 = vmatprep.mubr.f32.mxu0 0.0
        %507 = vmatmul.mubr.f32.gmra.mrb[0].mxu0 %v435
        %v508 = vpop.f32.mrb[0].mxu0
        %v509 = vadd.f32 0.0, %v508
        %v510 = vpop.f32.mrb[0].mxu0
        %511 = vdwg.mxu0
        %v512 = vld [vmem:[#allocation7 + $0xf2] sm:$0x1]
        %v514 = vsel %vm256, %v512, 0
        %516 = vmatprep.subr.mxu0 0.0
        %517 = vmatpush1.xpose.msra.mxu0 %v432
        %518 = vmatprep.subr.mxu0 0.0
        %519 = vmatpush1.xpose.msra.mxu0 %v435
        %520 = vmatprep.subr.mxu0 0.0
        %521 = vmatpush1.xpose.msra.mxu0 0.0
        %522 = vmatprep.subr.mxu0 0.0
        %523 = vmatpush1.xpose.msra.mxu0 0.0
        %524 = vmatprep.subr.mxu0 0.0
        %525 = vmatpush1.xpose.msra.mxu0 0.0
        %526 = vmatprep.subr.mxu0 0.0
        %527 = vmatpush1.xpose.msra.mxu0 0.0
        %528 = vmatprep.subr.mxu0 0.0
        %529 = vmatpush1.xpose.msra.mxu0 0.0
        %530 = vmatprep.subr.mxu0 0.0
        %531 = vmatpush1.xpose.msra.mxu0 0.0
        %532 = vmatprep.subr.mxu0 0.0
        %533 = vmatpush1.xpose.msra.mxu0 0.0
        %534 = vmatprep.subr.mxu0 0.0
        %535 = vmatpush1.xpose.msra.mxu0 0.0
        %536 = vmatprep.subr.mxu0 0.0
        %537 = vmatpush1.xpose.msra.mxu0 0.0
        %538 = vmatprep.subr.mxu0 0.0
        %539 = vmatpush1.xpose.msra.mxu0 0.0
        %540 = vmatprep.subr.mxu0 0.0
        %541 = vmatpush1.xpose.msra.mxu0 0.0
        %542 = vmatprep.subr.mxu0 0.0
        %543 = vmatpush1.xpose.msra.mxu0 0.0
        %544 = vmatprep.subr.mxu0 0.0
        %545 = vmatpush1.xpose.msra.mxu0 0.0
        %546 = vmatprep.subr.mxu0 0.0
        %547 = vmatpush1.xpose.msra.mxu0 0.0
        %548 = vmatprep.subr.mxu0 0.0
        %549 = vmatpush1.xpose.msra.mxu0 0.0
        %550 = vmatprep.subr.mxu0 0.0
        %551 = vmatpush1.xpose.msra.mxu0 0.0
        %552 = vmatprep.subr.mxu0 0.0
        %553 = vmatpush1.xpose.msra.mxu0 0.0
        %554 = vmatprep.subr.mxu0 0.0
        %555 = vmatpush1.xpose.msra.mxu0 0.0
        %556 = vmatprep.subr.mxu0 0.0
        %557 = vmatpush1.xpose.msra.mxu0 0.0
        %558 = vmatprep.subr.mxu0 0.0
        %559 = vmatpush1.xpose.msra.mxu0 0.0
        %560 = vmatprep.subr.mxu0 0.0
        %561 = vmatpush1.xpose.msra.mxu0 0.0
        %562 = vmatprep.subr.mxu0 0.0
        %563 = vmatpush1.xpose.msra.mxu0 0.0
        %564 = vmatprep.subr.mxu0 0.0
        %565 = vmatpush1.xpose.msra.mxu0 0.0
        %566 = vmatprep.subr.mxu0 0.0
        %567 = vmatpush1.xpose.msra.mxu0 0.0
        %568 = vmatprep.subr.mxu0 0.0
        %569 = vmatpush1.xpose.msra.mxu0 0.0
        %570 = vmatprep.subr.mxu0 0.0
        %571 = vmatpush1.xpose.msra.mxu0 0.0
        %572 = vmatprep.subr.mxu0 0.0
        %573 = vmatpush1.xpose.msra.mxu0 0.0
        %574 = vmatprep.subr.mxu0 0.0
        %575 = vmatpush1.xpose.msra.mxu0 0.0
        %576 = vmatprep.subr.mxu0 0.0
        %577 = vmatpush1.xpose.msra.mxu0 0.0
        %578 = vmatprep.subr.mxu0 0.0
        %579 = vmatpush1.xpose.msra.mxu0 0.0
        %580 = vmatprep.mubr.f32.mxu0 0.0
        %581 = vmatmul.mubr.f32.gmra.mrb[0].mxu0 %v514
        %v582 = vpop.f32.mrb[0].mxu0
        %v583 = vadd.f32 0.0, %v582
        %v584 = vpop.f32.mrb[0].mxu0
        %585 = vdwg.mxu0
        %587 = vset.pattern.permute.xlu0 32
        %588 = vperm.xlu0 %587, %v504
        %v589 = vpop.permute.xlu0 %588
        %592 = vset.pattern.permute.xlu0 32
        %593 = vperm.xlu0 %592, %v509
        %v594 = vpop.permute.xlu0 %593
        %v596 = vlaneseq
        %v597 = vshrl.u32 %v596, 7
        %v598 = vsub.s32 0, %v597
        %v599 = vrot.slane %v583, %v598
        %v600 = vadd.f32 %v589, %v599
        %v601 = vadd.f32 %v594, %v599
        %vm602 = vcmp.gt.f32.partialorder %v600, 0.0
        %vm603 = vcmp.gt.f32.partialorder %v601, 0.0
        %v604 = vmul.f32 %v600, 0.2
        %v605 = vmul.f32 %v601, 0.2
        %v606 = vsel %vm602, %v600, %v604
        %v607 = vsel %vm603, %v601, %v605
        %vm608 = vcmp.gt.f32.partialorder %v245, 0.0
        %vm609 = vcmp.gt.f32.partialorder %v246, 0.0
        %v610 = vsel %vm608, %v606, -1e+30
        %v611 = vsel %vm609, %v607, -1e+30
        %v612 = vsel %vm343, %v610, -inf
        %613 = vmax.xlane.f32.xlu0 %v612
        %v614 = vpop.xlane.xlu0 %613
        %v615 = vsel %vm343, %v611, -inf
        %616 = vmax.xlane.f32.xlu0 %v615
        %v617 = vpop.xlane.xlu0 %616
        %v618 = vsub.f32 %v610, %v614
        %v619 = vsub.f32 %v611, %v617
        %v620 = vmul.f32 %v618, 1.442695
        %v621 = vpow.pop %v620
        %v622 = vmul.f32 %v619, 1.442695
        %v623 = vpow.pop %v622
        %v624 = vsel %vm343, %v621, 0.0
        %625 = vadd.xlane.f32.xlu0 %v624
        %v626 = vpop.xlane.xlu0 %625
        %v627 = vsel %vm343, %v623, 0.0
        %628 = vadd.xlane.f32.xlu0 %v627
        %v629 = vpop.xlane.xlu0 %628
        %v630 = vrcp.pop %v626
        %v631 = vrcp.pop %v629
        %v632 = vmul.f32 %v621, %v630
        %v633 = vmul.f32 %v623, %v631
        %v635 = vsel %vm343, %v632, 0
        %v638 = vsel %vm343, %v633, 0
        %640 = vmatprep.subr.mxu0 0.0
        %641 = vmatpush1.msra.mxu0 %v504
        %642 = vmatprep.subr.mxu0 0.0
        %643 = vmatpush1.msra.mxu0 %v509
        %644 = vmatprep.subr.mxu0 0.0
        %645 = vmatpush1.msra.mxu0 0.0
        %646 = vmatprep.subr.mxu0 0.0
        %647 = vmatpush1.msra.mxu0 0.0
        %648 = vmatprep.subr.mxu0 0.0
        %649 = vmatpush1.msra.mxu0 0.0
        %650 = vmatprep.subr.mxu0 0.0
        %651 = vmatpush1.msra.mxu0 0.0
        %652 = vmatprep.subr.mxu0 0.0
        %653 = vmatpush1.msra.mxu0 0.0
        %654 = vmatprep.subr.mxu0 0.0
        %655 = vmatpush1.msra.mxu0 0.0
        %656 = vmatprep.subr.mxu0 0.0
        %657 = vmatpush1.msra.mxu0 0.0
        %658 = vmatprep.subr.mxu0 0.0
        %659 = vmatpush1.msra.mxu0 0.0
        %660 = vmatprep.subr.mxu0 0.0
        %661 = vmatpush1.msra.mxu0 0.0
        %662 = vmatprep.subr.mxu0 0.0
        %663 = vmatpush1.msra.mxu0 0.0
        %664 = vmatprep.subr.mxu0 0.0
        %665 = vmatpush1.msra.mxu0 0.0
        %666 = vmatprep.subr.mxu0 0.0
        %667 = vmatpush1.msra.mxu0 0.0
        %668 = vmatprep.subr.mxu0 0.0
        %669 = vmatpush1.msra.mxu0 0.0
        %670 = vmatprep.subr.mxu0 0.0
        %671 = vmatpush1.msra.mxu0 0.0
        %672 = vmatprep.subr.mxu0 0.0
        %673 = vmatpush1.msra.mxu0 0.0
        %674 = vmatprep.subr.mxu0 0.0
        %675 = vmatpush1.msra.mxu0 0.0
        %676 = vmatprep.subr.mxu0 0.0
        %677 = vmatpush1.msra.mxu0 0.0
        %678 = vmatprep.subr.mxu0 0.0
        %679 = vmatpush1.msra.mxu0 0.0
        %680 = vmatprep.subr.mxu0 0.0
        %681 = vmatpush1.msra.mxu0 0.0
        %682 = vmatprep.subr.mxu0 0.0
        %683 = vmatpush1.msra.mxu0 0.0
        %684 = vmatprep.subr.mxu0 0.0
        %685 = vmatpush1.msra.mxu0 0.0
        %686 = vmatprep.subr.mxu0 0.0
        %687 = vmatpush1.msra.mxu0 0.0
        %688 = vmatprep.subr.mxu0 0.0
        %689 = vmatpush1.msra.mxu0 0.0
        %690 = vmatprep.subr.mxu0 0.0
        %691 = vmatpush1.msra.mxu0 0.0
        %692 = vmatprep.subr.mxu0 0.0
        %693 = vmatpush1.msra.mxu0 0.0
        %694 = vmatprep.subr.mxu0 0.0
        %695 = vmatpush1.msra.mxu0 0.0
        %696 = vmatprep.subr.mxu0 0.0
        %697 = vmatpush1.msra.mxu0 0.0
        %698 = vmatprep.subr.mxu0 0.0
        %699 = vmatpush1.msra.mxu0 0.0
        %700 = vmatprep.subr.mxu0 0.0
        %701 = vmatpush1.msra.mxu0 0.0
        %702 = vmatprep.subr.mxu0 0.0
        %703 = vmatpush1.msra.mxu0 0.0
        %704 = vmatprep.mubr.f32.mxu0 0.0
        %705 = vmatmul.mubr.f32.gmra.mrb[0].mxu0 %v635
        %v706 = vpop.f32.mrb[0].mxu0
        %v707 = vadd.f32 0.0, %v706
        %v708 = vpop.f32.mrb[0].mxu0
        %709 = vmatprep.mubr.f32.mxu0 0.0
        %710 = vmatmul.mubr.f32.gmra.mrb[0].mxu0 %v638
        %v711 = vpop.f32.mrb[0].mxu0
        %v712 = vadd.f32 0.0, %v711
        %v713 = vpop.f32.mrb[0].mxu0
        %714 = vdwg.mxu0
        %v715 = vld [vmem:[#allocation7 + $0xf3] sm:$0x1]
        %v716 = vlaneseq
        %v717 = vshrl.u32 %v716, 7
        %v718 = vsub.s32 0, %v717
        %v719 = vrot.slane %v715, %v718
        %v720 = vmul.f32 %v707, %v719
        %v721 = vmul.f32 %v712, %v719
        %v722 = vld [vmem:[#allocation7 + $0xf4] sm:$0x1]
        %v723 = vlaneseq
        %v724 = vshrl.u32 %v723, 7
        %v725 = vsub.s32 0, %v724
        %v726 = vrot.slane %v722, %v725
        %v727 = vadd.f32 %v720, %v726
        %v728 = vadd.f32 %v721, %v726
        %v729 = vmax.f32 %v727, 0.0
        %v730 = vmax.f32 %v728, 0.0
        %v731 = vld [vmem:[#allocation7 + $0x40] sm:$0xff]
        %v732 = vld [vmem:[#allocation7 + $0x48] sm:$0xff]
        %v733 = vld [vmem:[#allocation7 + $0x50] sm:$0xff]
        %v734 = vld [vmem:[#allocation7 + $0x58] sm:$0xff]
        %v735 = vld [vmem:[#allocation7 + $0xf7] sm:$0x1]
        %v736 = vlaneseq
        %v737 = vshrl.u32 %v736, 7
        %v738 = vsub.s32 0, %v737
        %v739 = vrot.slane %v735, %v738
        %v741 = vsel %vm256, %v729, 0
        %v744 = vsel %vm256, %v730, 0
        %746 = vmatprep.subr.mxu0 0.0
        %747 = vmatpush1.msra.mxu0 %v731
        %748 = vmatprep.subr.mxu0 0.0
        %749 = vmatpush1.msra.mxu0 %v732
        %750 = vmatprep.subr.mxu0 0.0
        %751 = vmatpush1.msra.mxu0 %v733
        %752 = vmatprep.subr.mxu0 0.0
        %753 = vmatpush1.msra.mxu0 %v734
        %754 = vmatprep.subr.mxu0 0.0
        %755 = vmatpush1.msra.mxu0 0.0
        %756 = vmatprep.subr.mxu0 0.0
        %757 = vmatpush1.msra.mxu0 0.0
        %758 = vmatprep.subr.mxu0 0.0
        %759 = vmatpush1.msra.mxu0 0.0
        %760 = vmatprep.subr.mxu0 0.0
        %761 = vmatpush1.msra.mxu0 0.0
        %762 = vmatprep.subr.mxu0 0.0
        %763 = vmatpush1.msra.mxu0 0.0
        %764 = vmatprep.subr.mxu0 0.0
        %765 = vmatpush1.msra.mxu0 0.0
        %766 = vmatprep.subr.mxu0 0.0
        %767 = vmatpush1.msra.mxu0 0.0
        %768 = vmatprep.subr.mxu0 0.0
        %769 = vmatpush1.msra.mxu0 0.0
        %770 = vmatprep.subr.mxu0 0.0
        %771 = vmatpush1.msra.mxu0 0.0
        %772 = vmatprep.subr.mxu0 0.0
        %773 = vmatpush1.msra.mxu0 0.0
        %774 = vmatprep.subr.mxu0 0.0
        %775 = vmatpush1.msra.mxu0 0.0
        %776 = vmatprep.subr.mxu0 0.0
        %777 = vmatpush1.msra.mxu0 0.0
        %778 = vmatprep.subr.mxu0 0.0
        %779 = vmatpush1.msra.mxu0 0.0
        %780 = vmatprep.subr.mxu0 0.0
        %781 = vmatpush1.msra.mxu0 0.0
        %782 = vmatprep.subr.mxu0 0.0
        %783 = vmatpush1.msra.mxu0 0.0
        %784 = vmatprep.subr.mxu0 0.0
        %785 = vmatpush1.msra.mxu0 0.0
        %786 = vmatprep.subr.mxu0 0.0
        %787 = vmatpush1.msra.mxu0 0.0
        %788 = vmatprep.subr.mxu0 0.0
        %789 = vmatpush1.msra.mxu0 0.0
        %790 = vmatprep.subr.mxu0 0.0
        %791 = vmatpush1.msra.mxu0 0.0
        %792 = vmatprep.subr.mxu0 0.0
        %793 = vmatpush1.msra.mxu0 0.0
        %794 = vmatprep.subr.mxu0 0.0
        %795 = vmatpush1.msra.mxu0 0.0
        %796 = vmatprep.subr.mxu0 0.0
        %797 = vmatpush1.msra.mxu0 0.0
        %798 = vmatprep.subr.mxu0 0.0
        %799 = vmatpush1.msra.mxu0 0.0
        %800 = vmatprep.subr.mxu0 0.0
        %801 = vmatpush1.msra.mxu0 0.0
        %802 = vmatprep.subr.mxu0 0.0
        %803 = vmatpush1.msra.mxu0 0.0
        %804 = vmatprep.subr.mxu0 0.0
        %805 = vmatpush1.msra.mxu0 0.0
        %806 = vmatprep.subr.mxu0 0.0
        %807 = vmatpush1.msra.mxu0 0.0
        %808 = vmatprep.subr.mxu0 0.0
        %809 = vmatpush1.msra.mxu0 0.0
        %810 = vmatprep.mubr.f32.mxu0 0.0
        %811 = vmatmul.mubr.f32.gmra.mrb[0].mxu0 %v741
        %v812 = vpop.f32.mrb[0].mxu0
        %v813 = vadd.f32 %v739, %v812
        %v814 = vpop.f32.mrb[0].mxu0
        %815 = vmatprep.mubr.f32.mxu0 0.0
        %816 = vmatmul.mubr.f32.gmra.mrb[0].mxu0 %v744
        %v817 = vpop.f32.mrb[0].mxu0
        %v818 = vadd.f32 %v739, %v817
        %v819 = vpop.f32.mrb[0].mxu0
        %820 = vdwg.mxu0
        %v821 = vtanh.pop %v813
        %v822 = vtanh.pop %v818
        %v823 = vmul.f32 %v821, 0.5
        %v824 = vmul.f32 %v822, 0.5
        %v825 = vadd.f32 %v823, 0.5
        %v826 = vadd.f32 %v824, 0.5
        %829 = vrot.lane.b32.xlu0 %v821, 96
        %v830 = vpop.permute.xlu0 %829
        %831 = vrot.lane.b32.xlu0 %v822, 96
        %v832 = vpop.permute.xlu0 %831
        %v835 = vmul.f32 %v825, %v830
        %v836 = vmul.f32 %v826, %v832
        %v837 = vtanh.pop %v835
        %v838 = vtanh.pop %v836
        %841 = vrot.lane.b32.xlu0 %v837, 64
        %v842 = vpop.permute.xlu0 %841
        %843 = vrot.lane.b32.xlu0 %v838, 64
        %v844 = vpop.permute.xlu0 %843
        %v847 = vmul.f32 %v825, %v842
        %v848 = vmul.f32 %v826, %v844
        %v849 = vld [vmem:[#allocation7 + $0x60] sm:$0xff]
        %v850 = vld [vmem:[#allocation7 + $0x68] sm:$0xff]
        %v851 = vld [vmem:[#allocation7 + $0x70] sm:$0xff]
        %v852 = vld [vmem:[#allocation7 + $0x78] sm:$0xff]
        %v853 = vld [vmem:[#allocation7 + $0xf8] sm:$0x1]
        %v854 = vlaneseq
        %v855 = vshrl.u32 %v854, 7
        %v856 = vsub.s32 0, %v855
        %v857 = vrot.slane %v853, %v856
        %860 = vrot.lane.b32.xlu0 %v847, 64
        %v861 = vpop.permute.xlu0 %860
        %862 = vrot.lane.b32.xlu0 %v848, 64
        %v863 = vpop.permute.xlu0 %862
        %v864 = vsel %vm256, %v861, 0
        %v866 = vsel %vm256, %v863, 0
        %868 = vmatprep.subr.mxu0 0.0
        %869 = vmatpush1.msra.mxu0 %v849
        %870 = vmatprep.subr.mxu0 0.0
        %871 = vmatpush1.msra.mxu0 %v850
        %872 = vmatprep.subr.mxu0 0.0
        %873 = vmatpush1.msra.mxu0 %v851
        %874 = vmatprep.subr.mxu0 0.0
        %875 = vmatpush1.msra.mxu0 %v852
        %876 = vmatprep.subr.mxu0 0.0
        %877 = vmatpush1.msra.mxu0 0.0
        %878 = vmatprep.subr.mxu0 0.0
        %879 = vmatpush1.msra.mxu0 0.0
        %880 = vmatprep.subr.mxu0 0.0
        %881 = vmatpush1.msra.mxu0 0.0
        %882 = vmatprep.subr.mxu0 0.0
        %883 = vmatpush1.msra.mxu0 0.0
        %884 = vmatprep.subr.mxu0 0.0
        %885 = vmatpush1.msra.mxu0 0.0
        %886 = vmatprep.subr.mxu0 0.0
        %887 = vmatpush1.msra.mxu0 0.0
        %888 = vmatprep.subr.mxu0 0.0
        %889 = vmatpush1.msra.mxu0 0.0
        %890 = vmatprep.subr.mxu0 0.0
        %891 = vmatpush1.msra.mxu0 0.0
        %892 = vmatprep.subr.mxu0 0.0
        %893 = vmatpush1.msra.mxu0 0.0
        %894 = vmatprep.subr.mxu0 0.0
        %895 = vmatpush1.msra.mxu0 0.0
        %896 = vmatprep.subr.mxu0 0.0
        %897 = vmatpush1.msra.mxu0 0.0
        %898 = vmatprep.subr.mxu0 0.0
        %899 = vmatpush1.msra.mxu0 0.0
        %900 = vmatprep.subr.mxu0 0.0
        %901 = vmatpush1.msra.mxu0 0.0
        %902 = vmatprep.subr.mxu0 0.0
        %903 = vmatpush1.msra.mxu0 0.0
        %904 = vmatprep.subr.mxu0 0.0
        %905 = vmatpush1.msra.mxu0 0.0
        %906 = vmatprep.subr.mxu0 0.0
        %907 = vmatpush1.msra.mxu0 0.0
        %908 = vmatprep.subr.mxu0 0.0
        %909 = vmatpush1.msra.mxu0 0.0
        %910 = vmatprep.subr.mxu0 0.0
        %911 = vmatpush1.msra.mxu0 0.0
        %912 = vmatprep.subr.mxu0 0.0
        %913 = vmatpush1.msra.mxu0 0.0
        %914 = vmatprep.subr.mxu0 0.0
        %915 = vmatpush1.msra.mxu0 0.0
        %916 = vmatprep.subr.mxu0 0.0
        %917 = vmatpush1.msra.mxu0 0.0
        %918 = vmatprep.subr.mxu0 0.0
        %919 = vmatpush1.msra.mxu0 0.0
        %920 = vmatprep.subr.mxu0 0.0
        %921 = vmatpush1.msra.mxu0 0.0
        %922 = vmatprep.subr.mxu0 0.0
        %923 = vmatpush1.msra.mxu0 0.0
        %924 = vmatprep.subr.mxu0 0.0
        %925 = vmatpush1.msra.mxu0 0.0
        %926 = vmatprep.subr.mxu0 0.0
        %927 = vmatpush1.msra.mxu0 0.0
        %928 = vmatprep.subr.mxu0 0.0
        %929 = vmatpush1.msra.mxu0 0.0
        %930 = vmatprep.subr.mxu0 0.0
        %931 = vmatpush1.msra.mxu0 0.0
        %932 = vmatprep.mubr.f32.mxu0 0.0
        %933 = vmatmul.mubr.f32.gmra.mrb[0].mxu0 %v864
        %v934 = vpop.f32.mrb[0].mxu0
        %v935 = vadd.f32 %v857, %v934
        %v936 = vpop.f32.mrb[0].mxu0
        %937 = vmatprep.mubr.f32.mxu0 0.0
        %938 = vmatmul.mubr.f32.gmra.mrb[0].mxu0 %v866
        %v939 = vpop.f32.mrb[0].mxu0
        %v940 = vadd.f32 %v857, %v939
        %v941 = vpop.f32.mrb[0].mxu0
        %942 = vdwg.mxu0
        %v943 = vtanh.pop %v935
        %v944 = vtanh.pop %v940
        %v945 = vmul.f32 %v943, 0.5
        %v946 = vmul.f32 %v944, 0.5
        %v947 = vadd.f32 %v945, 0.5
        %v948 = vadd.f32 %v946, 0.5
        %951 = vrot.lane.b32.xlu0 %v943, 96
        %v952 = vpop.permute.xlu0 %951
        %953 = vrot.lane.b32.xlu0 %v944, 96
        %v954 = vpop.permute.xlu0 %953
        %v957 = vmul.f32 %v947, %v952
        %v958 = vmul.f32 %v948, %v954
        %v959 = vtanh.pop %v957
        %v960 = vtanh.pop %v958
        %963 = vrot.lane.b32.xlu0 %v959, 64
        %v964 = vpop.permute.xlu0 %963
        %965 = vrot.lane.b32.xlu0 %v960, 64
        %v966 = vpop.permute.xlu0 %965
        %v969 = vmul.f32 %v947, %v964
        %v970 = vmul.f32 %v948, %v966
        %v971 = vld [vmem:[#allocation7 + $0x80] sm:$0xff]
        %v972 = vld [vmem:[#allocation7 + $0x88] sm:$0xff]
        %v973 = vld [vmem:[#allocation7 + $0x90] sm:$0xff]
        %v974 = vld [vmem:[#allocation7 + $0x98] sm:$0xff]
        %v975 = vld [vmem:[#allocation7 + $0xf9] sm:$0x1]
        %v976 = vlaneseq
        %v977 = vshrl.u32 %v976, 7
        %v978 = vsub.s32 0, %v977
        %v979 = vrot.slane %v975, %v978
        %982 = vrot.lane.b32.xlu0 %v969, 64
        %v983 = vpop.permute.xlu0 %982
        %984 = vrot.lane.b32.xlu0 %v970, 64
        %v985 = vpop.permute.xlu0 %984
        %v986 = vsel %vm256, %v983, 0
        %v988 = vsel %vm256, %v985, 0
        %990 = vmatprep.subr.mxu0 0.0
        %991 = vmatpush1.msra.mxu0 %v971
        %992 = vmatprep.subr.mxu0 0.0
        %993 = vmatpush1.msra.mxu0 %v972
        %994 = vmatprep.subr.mxu0 0.0
        %995 = vmatpush1.msra.mxu0 %v973
        %996 = vmatprep.subr.mxu0 0.0
        %997 = vmatpush1.msra.mxu0 %v974
        %998 = vmatprep.subr.mxu0 0.0
        %999 = vmatpush1.msra.mxu0 0.0
        %1000 = vmatprep.subr.mxu0 0.0
        %1001 = vmatpush1.msra.mxu0 0.0
        %1002 = vmatprep.subr.mxu0 0.0
        %1003 = vmatpush1.msra.mxu0 0.0
        %1004 = vmatprep.subr.mxu0 0.0
        %1005 = vmatpush1.msra.mxu0 0.0
        %1006 = vmatprep.subr.mxu0 0.0
        %1007 = vmatpush1.msra.mxu0 0.0
        %1008 = vmatprep.subr.mxu0 0.0
        %1009 = vmatpush1.msra.mxu0 0.0
        %1010 = vmatprep.subr.mxu0 0.0
        %1011 = vmatpush1.msra.mxu0 0.0
        %1012 = vmatprep.subr.mxu0 0.0
        %1013 = vmatpush1.msra.mxu0 0.0
        %1014 = vmatprep.subr.mxu0 0.0
        %1015 = vmatpush1.msra.mxu0 0.0
        %1016 = vmatprep.subr.mxu0 0.0
        %1017 = vmatpush1.msra.mxu0 0.0
        %1018 = vmatprep.subr.mxu0 0.0
        %1019 = vmatpush1.msra.mxu0 0.0
        %1020 = vmatprep.subr.mxu0 0.0
        %1021 = vmatpush1.msra.mxu0 0.0
        %1022 = vmatprep.subr.mxu0 0.0
        %1023 = vmatpush1.msra.mxu0 0.0
        %1024 = vmatprep.subr.mxu0 0.0
        %1025 = vmatpush1.msra.mxu0 0.0
        %1026 = vmatprep.subr.mxu0 0.0
        %1027 = vmatpush1.msra.mxu0 0.0
        %1028 = vmatprep.subr.mxu0 0.0
        %1029 = vmatpush1.msra.mxu0 0.0
        %1030 = vmatprep.subr.mxu0 0.0
        %1031 = vmatpush1.msra.mxu0 0.0
        %1032 = vmatprep.subr.mxu0 0.0
        %1033 = vmatpush1.msra.mxu0 0.0
        %1034 = vmatprep.subr.mxu0 0.0
        %1035 = vmatpush1.msra.mxu0 0.0
        %1036 = vmatprep.subr.mxu0 0.0
        %1037 = vmatpush1.msra.mxu0 0.0
        %1038 = vmatprep.subr.mxu0 0.0
        %1039 = vmatpush1.msra.mxu0 0.0
        %1040 = vmatprep.subr.mxu0 0.0
        %1041 = vmatpush1.msra.mxu0 0.0
        %1042 = vmatprep.subr.mxu0 0.0
        %1043 = vmatpush1.msra.mxu0 0.0
        %1044 = vmatprep.subr.mxu0 0.0
        %1045 = vmatpush1.msra.mxu0 0.0
        %1046 = vmatprep.subr.mxu0 0.0
        %1047 = vmatpush1.msra.mxu0 0.0
        %1048 = vmatprep.subr.mxu0 0.0
        %1049 = vmatpush1.msra.mxu0 0.0
        %1050 = vmatprep.subr.mxu0 0.0
        %1051 = vmatpush1.msra.mxu0 0.0
        %1052 = vmatprep.subr.mxu0 0.0
        %1053 = vmatpush1.msra.mxu0 0.0
        %1054 = vmatprep.mubr.f32.mxu0 0.0
        %1055 = vmatmul.mubr.f32.gmra.mrb[0].mxu0 %v986
        %v1056 = vpop.f32.mrb[0].mxu0
        %v1057 = vadd.f32 %v979, %v1056
        %v1058 = vpop.f32.mrb[0].mxu0
        %1059 = vmatprep.mubr.f32.mxu0 0.0
        %1060 = vmatmul.mubr.f32.gmra.mrb[0].mxu0 %v988
        %v1061 = vpop.f32.mrb[0].mxu0
        %v1062 = vadd.f32 %v979, %v1061
        %v1063 = vpop.f32.mrb[0].mxu0
        %1064 = vdwg.mxu0
        %v1065 = vtanh.pop %v1057
        %v1066 = vtanh.pop %v1062
        %v1067 = vmul.f32 %v1065, 0.5
        %v1068 = vmul.f32 %v1066, 0.5
        %v1069 = vadd.f32 %v1067, 0.5
        %v1070 = vadd.f32 %v1068, 0.5
        %1073 = vrot.lane.b32.xlu0 %v1065, 96
        %v1074 = vpop.permute.xlu0 %1073
        %1075 = vrot.lane.b32.xlu0 %v1066, 96
        %v1076 = vpop.permute.xlu0 %1075
        %v1079 = vmul.f32 %v1069, %v1074
        %v1080 = vmul.f32 %v1070, %v1076
        %v1081 = vtanh.pop %v1079
        %v1082 = vtanh.pop %v1080
        %1085 = vrot.lane.b32.xlu0 %v1081, 64
        %v1086 = vpop.permute.xlu0 %1085
        %1087 = vrot.lane.b32.xlu0 %v1082, 64
        %v1088 = vpop.permute.xlu0 %1087
        %v1091 = vmul.f32 %v1069, %v1086
        %v1092 = vmul.f32 %v1070, %v1088
        %v1093 = vld [vmem:[#allocation7 + $0xa0] sm:$0xff]
        %v1094 = vld [vmem:[#allocation7 + $0xa8] sm:$0xff]
        %v1095 = vld [vmem:[#allocation7 + $0xb0] sm:$0xff]
        %v1096 = vld [vmem:[#allocation7 + $0xb8] sm:$0xff]
        %v1097 = vld [vmem:[#allocation7 + $0xfa] sm:$0x1]
        %v1098 = vlaneseq
        %v1099 = vshrl.u32 %v1098, 7
        %v1100 = vsub.s32 0, %v1099
        %v1101 = vrot.slane %v1097, %v1100
        %1104 = vrot.lane.b32.xlu0 %v1091, 64
        %v1105 = vpop.permute.xlu0 %1104
        %1106 = vrot.lane.b32.xlu0 %v1092, 64
        %v1107 = vpop.permute.xlu0 %1106
        %v1108 = vsel %vm256, %v1105, 0
        %v1110 = vsel %vm256, %v1107, 0
        %1112 = vmatprep.subr.mxu0 0.0
        %1113 = vmatpush1.msra.mxu0 %v1093
        %1114 = vmatprep.subr.mxu0 0.0
        %1115 = vmatpush1.msra.mxu0 %v1094
        %1116 = vmatprep.subr.mxu0 0.0
        %1117 = vmatpush1.msra.mxu0 %v1095
        %1118 = vmatprep.subr.mxu0 0.0
        %1119 = vmatpush1.msra.mxu0 %v1096
        %1120 = vmatprep.subr.mxu0 0.0
        %1121 = vmatpush1.msra.mxu0 0.0
        %1122 = vmatprep.subr.mxu0 0.0
        %1123 = vmatpush1.msra.mxu0 0.0
        %1124 = vmatprep.subr.mxu0 0.0
        %1125 = vmatpush1.msra.mxu0 0.0
        %1126 = vmatprep.subr.mxu0 0.0
        %1127 = vmatpush1.msra.mxu0 0.0
        %1128 = vmatprep.subr.mxu0 0.0
        %1129 = vmatpush1.msra.mxu0 0.0
        %1130 = vmatprep.subr.mxu0 0.0
        %1131 = vmatpush1.msra.mxu0 0.0
        %1132 = vmatprep.subr.mxu0 0.0
        %1133 = vmatpush1.msra.mxu0 0.0
        %1134 = vmatprep.subr.mxu0 0.0
        %1135 = vmatpush1.msra.mxu0 0.0
        %1136 = vmatprep.subr.mxu0 0.0
        %1137 = vmatpush1.msra.mxu0 0.0
        %1138 = vmatprep.subr.mxu0 0.0
        %1139 = vmatpush1.msra.mxu0 0.0
        %1140 = vmatprep.subr.mxu0 0.0
        %1141 = vmatpush1.msra.mxu0 0.0
        %1142 = vmatprep.subr.mxu0 0.0
        %1143 = vmatpush1.msra.mxu0 0.0
        %1144 = vmatprep.subr.mxu0 0.0
        %1145 = vmatpush1.msra.mxu0 0.0
        %1146 = vmatprep.subr.mxu0 0.0
        %1147 = vmatpush1.msra.mxu0 0.0
        %1148 = vmatprep.subr.mxu0 0.0
        %1149 = vmatpush1.msra.mxu0 0.0
        %1150 = vmatprep.subr.mxu0 0.0
        %1151 = vmatpush1.msra.mxu0 0.0
        %1152 = vmatprep.subr.mxu0 0.0
        %1153 = vmatpush1.msra.mxu0 0.0
        %1154 = vmatprep.subr.mxu0 0.0
        %1155 = vmatpush1.msra.mxu0 0.0
        %1156 = vmatprep.subr.mxu0 0.0
        %1157 = vmatpush1.msra.mxu0 0.0
        %1158 = vmatprep.subr.mxu0 0.0
        %1159 = vmatpush1.msra.mxu0 0.0
        %1160 = vmatprep.subr.mxu0 0.0
        %1161 = vmatpush1.msra.mxu0 0.0
        %1162 = vmatprep.subr.mxu0 0.0
        %1163 = vmatpush1.msra.mxu0 0.0
        %1164 = vmatprep.subr.mxu0 0.0
        %1165 = vmatpush1.msra.mxu0 0.0
        %1166 = vmatprep.subr.mxu0 0.0
        %1167 = vmatpush1.msra.mxu0 0.0
        %1168 = vmatprep.subr.mxu0 0.0
        %1169 = vmatpush1.msra.mxu0 0.0
        %1170 = vmatprep.subr.mxu0 0.0
        %1171 = vmatpush1.msra.mxu0 0.0
        %1172 = vmatprep.subr.mxu0 0.0
        %1173 = vmatpush1.msra.mxu0 0.0
        %1174 = vmatprep.subr.mxu0 0.0
        %1175 = vmatpush1.msra.mxu0 0.0
        %1176 = vmatprep.mubr.f32.mxu0 0.0
        %1177 = vmatmul.mubr.f32.gmra.mrb[0].mxu0 %v1108
        %v1178 = vpop.f32.mrb[0].mxu0
        %v1179 = vadd.f32 %v1101, %v1178
        %v1180 = vpop.f32.mrb[0].mxu0
        %1181 = vmatprep.mubr.f32.mxu0 0.0
        %1182 = vmatmul.mubr.f32.gmra.mrb[0].mxu0 %v1110
        %v1183 = vpop.f32.mrb[0].mxu0
        %v1184 = vadd.f32 %v1101, %v1183
        %v1185 = vpop.f32.mrb[0].mxu0
        %1186 = vdwg.mxu0
        %v1187 = vtanh.pop %v1179
        %v1188 = vtanh.pop %v1184
        %v1189 = vmul.f32 %v1187, 0.5
        %v1190 = vmul.f32 %v1188, 0.5
        %v1191 = vadd.f32 %v1189, 0.5
        %v1192 = vadd.f32 %v1190, 0.5
        %1195 = vrot.lane.b32.xlu0 %v1187, 96
        %v1196 = vpop.permute.xlu0 %1195
        %1197 = vrot.lane.b32.xlu0 %v1188, 96
        %v1198 = vpop.permute.xlu0 %1197
        %v1201 = vmul.f32 %v1191, %v1196
        %v1202 = vmul.f32 %v1192, %v1198
        %v1203 = vtanh.pop %v1201
        %v1204 = vtanh.pop %v1202
        %1207 = vrot.lane.b32.xlu0 %v1203, 64
        %v1208 = vpop.permute.xlu0 %1207
        %1209 = vrot.lane.b32.xlu0 %v1204, 64
        %v1210 = vpop.permute.xlu0 %1209
        %v1213 = vmul.f32 %v1191, %v1208
        %v1214 = vmul.f32 %v1192, %v1210
        %v1215 = vld [vmem:[#allocation7 + $0xc0] sm:$0xff]
        %v1216 = vld [vmem:[#allocation7 + $0xc8] sm:$0xff]
        %v1217 = vld [vmem:[#allocation7 + $0xd0] sm:$0xff]
        %v1218 = vld [vmem:[#allocation7 + $0xd8] sm:$0xff]
        %v1219 = vld [vmem:[#allocation7 + $0xf5] sm:$0x1]
        %v1220 = vlaneseq
        %v1221 = vshrl.u32 %v1220, 7
        %v1222 = vsub.s32 0, %v1221
        %v1223 = vrot.slane %v1219, %v1222
        %1226 = vrot.lane.b32.xlu0 %v1213, 64
        %v1227 = vpop.permute.xlu0 %1226
        %1228 = vrot.lane.b32.xlu0 %v1214, 64
        %v1229 = vpop.permute.xlu0 %1228
        %v1230 = vsel %vm256, %v1227, 0
        %v1232 = vsel %vm256, %v1229, 0
        %1234 = vmatprep.subr.mxu0 0.0
        %1235 = vmatpush1.msra.mxu0 %v1215
        %1236 = vmatprep.subr.mxu0 0.0
        %1237 = vmatpush1.msra.mxu0 %v1216
        %1238 = vmatprep.subr.mxu0 0.0
        %1239 = vmatpush1.msra.mxu0 %v1217
        %1240 = vmatprep.subr.mxu0 0.0
        %1241 = vmatpush1.msra.mxu0 %v1218
        %1242 = vmatprep.subr.mxu0 0.0
        %1243 = vmatpush1.msra.mxu0 0.0
        %1244 = vmatprep.subr.mxu0 0.0
        %1245 = vmatpush1.msra.mxu0 0.0
        %1246 = vmatprep.subr.mxu0 0.0
        %1247 = vmatpush1.msra.mxu0 0.0
        %1248 = vmatprep.subr.mxu0 0.0
        %1249 = vmatpush1.msra.mxu0 0.0
        %1250 = vmatprep.subr.mxu0 0.0
        %1251 = vmatpush1.msra.mxu0 0.0
        %1252 = vmatprep.subr.mxu0 0.0
        %1253 = vmatpush1.msra.mxu0 0.0
        %1254 = vmatprep.subr.mxu0 0.0
        %1255 = vmatpush1.msra.mxu0 0.0
        %1256 = vmatprep.subr.mxu0 0.0
        %1257 = vmatpush1.msra.mxu0 0.0
        %1258 = vmatprep.subr.mxu0 0.0
        %1259 = vmatpush1.msra.mxu0 0.0
        %1260 = vmatprep.subr.mxu0 0.0
        %1261 = vmatpush1.msra.mxu0 0.0
        %1262 = vmatprep.subr.mxu0 0.0
        %1263 = vmatpush1.msra.mxu0 0.0
        %1264 = vmatprep.subr.mxu0 0.0
        %1265 = vmatpush1.msra.mxu0 0.0
        %1266 = vmatprep.subr.mxu0 0.0
        %1267 = vmatpush1.msra.mxu0 0.0
        %1268 = vmatprep.subr.mxu0 0.0
        %1269 = vmatpush1.msra.mxu0 0.0
        %1270 = vmatprep.subr.mxu0 0.0
        %1271 = vmatpush1.msra.mxu0 0.0
        %1272 = vmatprep.subr.mxu0 0.0
        %1273 = vmatpush1.msra.mxu0 0.0
        %1274 = vmatprep.subr.mxu0 0.0
        %1275 = vmatpush1.msra.mxu0 0.0
        %1276 = vmatprep.subr.mxu0 0.0
        %1277 = vmatpush1.msra.mxu0 0.0
        %1278 = vmatprep.subr.mxu0 0.0
        %1279 = vmatpush1.msra.mxu0 0.0
        %1280 = vmatprep.subr.mxu0 0.0
        %1281 = vmatpush1.msra.mxu0 0.0
        %1282 = vmatprep.subr.mxu0 0.0
        %1283 = vmatpush1.msra.mxu0 0.0
        %1284 = vmatprep.subr.mxu0 0.0
        %1285 = vmatpush1.msra.mxu0 0.0
        %1286 = vmatprep.subr.mxu0 0.0
        %1287 = vmatpush1.msra.mxu0 0.0
        %1288 = vmatprep.subr.mxu0 0.0
        %1289 = vmatpush1.msra.mxu0 0.0
        %1290 = vmatprep.subr.mxu0 0.0
        %1291 = vmatpush1.msra.mxu0 0.0
        %1292 = vmatprep.subr.mxu0 0.0
        %1293 = vmatpush1.msra.mxu0 0.0
        %1294 = vmatprep.subr.mxu0 0.0
        %1295 = vmatpush1.msra.mxu0 0.0
        %1296 = vmatprep.subr.mxu0 0.0
        %1297 = vmatpush1.msra.mxu0 0.0
        %1298 = vmatprep.mubr.f32.mxu0 0.0
        %1299 = vmatmul.mubr.f32.gmra.mrb[0].mxu0 %v1230
        %v1300 = vpop.f32.mrb[0].mxu0
        %v1301 = vadd.f32 %v1223, %v1300
        %v1302 = vpop.f32.mrb[0].mxu0
        %1303 = vmatprep.mubr.f32.mxu0 0.0
        %1304 = vmatmul.mubr.f32.gmra.mrb[0].mxu0 %v1232
        %v1305 = vpop.f32.mrb[0].mxu0
        %v1306 = vadd.f32 %v1223, %v1305
        %v1307 = vpop.f32.mrb[0].mxu0
        %1308 = vdwg.mxu0
        %v1309 = vmax.f32 %v1301, 0.0
        %v1310 = vmax.f32 %v1306, 0.0
        %v1311 = vld [vmem:[#allocation7 + $0xe0] sm:$0xff]
        %v1312 = vld [vmem:[#allocation7 + $0xe8] sm:$0xff]
        %v1313 = vld [vmem:[#allocation7 + $0xf6] sm:$0x1]
        %v1314 = vlaneseq
        %v1315 = vshrl.u32 %v1314, 7
        %v1316 = vsub.s32 0, %v1315
        %v1317 = vrot.slane %v1313, %v1316
        %v1319 = vsel %vm343, %v1309, 0
        %v1322 = vsel %vm343, %v1310, 0
        %1324 = vmatprep.subr.mxu0 0.0
        %1325 = vmatpush1.msra.mxu0 %v1311
        %1326 = vmatprep.subr.mxu0 0.0
        %1327 = vmatpush1.msra.mxu0 %v1312
        %1328 = vmatprep.subr.mxu0 0.0
        %1329 = vmatpush1.msra.mxu0 0.0
        %1330 = vmatprep.subr.mxu0 0.0
        %1331 = vmatpush1.msra.mxu0 0.0
        %1332 = vmatprep.subr.mxu0 0.0
        %1333 = vmatpush1.msra.mxu0 0.0
        %1334 = vmatprep.subr.mxu0 0.0
        %1335 = vmatpush1.msra.mxu0 0.0
        %1336 = vmatprep.subr.mxu0 0.0
        %1337 = vmatpush1.msra.mxu0 0.0
        %1338 = vmatprep.subr.mxu0 0.0
        %1339 = vmatpush1.msra.mxu0 0.0
        %1340 = vmatprep.subr.mxu0 0.0
        %1341 = vmatpush1.msra.mxu0 0.0
        %1342 = vmatprep.subr.mxu0 0.0
        %1343 = vmatpush1.msra.mxu0 0.0
        %1344 = vmatprep.subr.mxu0 0.0
        %1345 = vmatpush1.msra.mxu0 0.0
        %1346 = vmatprep.subr.mxu0 0.0
        %1347 = vmatpush1.msra.mxu0 0.0
        %1348 = vmatprep.subr.mxu0 0.0
        %1349 = vmatpush1.msra.mxu0 0.0
        %1350 = vmatprep.subr.mxu0 0.0
        %1351 = vmatpush1.msra.mxu0 0.0
        %1352 = vmatprep.subr.mxu0 0.0
        %1353 = vmatpush1.msra.mxu0 0.0
        %1354 = vmatprep.subr.mxu0 0.0
        %1355 = vmatpush1.msra.mxu0 0.0
        %1356 = vmatprep.subr.mxu0 0.0
        %1357 = vmatpush1.msra.mxu0 0.0
        %1358 = vmatprep.subr.mxu0 0.0
        %1359 = vmatpush1.msra.mxu0 0.0
        %1360 = vmatprep.subr.mxu0 0.0
        %1361 = vmatpush1.msra.mxu0 0.0
        %1362 = vmatprep.subr.mxu0 0.0
        %1363 = vmatpush1.msra.mxu0 0.0
        %1364 = vmatprep.subr.mxu0 0.0
        %1365 = vmatpush1.msra.mxu0 0.0
        %1366 = vmatprep.subr.mxu0 0.0
        %1367 = vmatpush1.msra.mxu0 0.0
        %1368 = vmatprep.subr.mxu0 0.0
        %1369 = vmatpush1.msra.mxu0 0.0
        %1370 = vmatprep.subr.mxu0 0.0
        %1371 = vmatpush1.msra.mxu0 0.0
        %1372 = vmatprep.subr.mxu0 0.0
        %1373 = vmatpush1.msra.mxu0 0.0
        %1374 = vmatprep.subr.mxu0 0.0
        %1375 = vmatpush1.msra.mxu0 0.0
        %1376 = vmatprep.subr.mxu0 0.0
        %1377 = vmatpush1.msra.mxu0 0.0
        %1378 = vmatprep.subr.mxu0 0.0
        %1379 = vmatpush1.msra.mxu0 0.0
        %1380 = vmatprep.subr.mxu0 0.0
        %1381 = vmatpush1.msra.mxu0 0.0
        %1382 = vmatprep.subr.mxu0 0.0
        %1383 = vmatpush1.msra.mxu0 0.0
        %1384 = vmatprep.subr.mxu0 0.0
        %1385 = vmatpush1.msra.mxu0 0.0
        %1386 = vmatprep.subr.mxu0 0.0
        %1387 = vmatpush1.msra.mxu0 0.0
        %1388 = vmatprep.mubr.f32.mxu0 0.0
        %1389 = vmatmul.mubr.f32.gmra.mrb[0].mxu0 %v1319
        %v1390 = vpop.f32.mrb[0].mxu0
        %v1391 = vadd.f32 %v1317, %v1390
        %v1392 = vpop.f32.mrb[0].mxu0
        %1393 = vmatprep.mubr.f32.mxu0 0.0
        %1394 = vmatmul.mubr.f32.gmra.mrb[0].mxu0 %v1322
        %v1395 = vpop.f32.mrb[0].mxu0
        %v1396 = vadd.f32 %v1317, %v1395
        %v1397 = vpop.f32.mrb[0].mxu0
        %1398 = vdwg.mxu0
        %1399 = vmax.xlane.f32.xlu0 %v1391
        %v1400 = vpop.xlane.xlu0 %1399
        %1401 = vmax.xlane.f32.xlu0 %v1396
        %v1402 = vpop.xlane.xlu0 %1401
        %v1403 = vsub.f32 %v1391, %v1400
        %v1404 = vsub.f32 %v1396, %v1402
        %v1405 = vmul.f32 %v1403, 1.442695
        %v1406 = vpow.pop %v1405
        %v1407 = vmul.f32 %v1404, 1.442695
        %v1408 = vpow.pop %v1407
        %1409 = vadd.xlane.f32.xlu0 %v1406
        %v1410 = vpop.xlane.xlu0 %1409
        %1411 = vadd.xlane.f32.xlu0 %v1408
        %v1412 = vpop.xlane.xlu0 %1411
        %v1413 = vlog2.pop %v1410
        %v1414 = vmul.f32 %v1413, 0.6931472
        %v1415 = vlog2.pop %v1412
        %v1416 = vmul.f32 %v1415, 0.6931472
        %v1417 = vadd.f32 %v1414, %v1400
        %v1418 = vadd.f32 %v1416, %v1402
        %v1419 = vsub.f32 %v1391, %v1417
        %v1420 = vsub.f32 %v1396, %v1418
        %1421 = vst [vmem:[%s242] sm:$0xff] %v1419
        %1422 = vst [vmem:[%s242 + $0x8] sm:$0xff] %v1420
        %s1423 = sand.u32 %s104, 1
        %s1424 = scalar_lea.sflag [#allocation4], %s1423
        %s1425 = sand.u32 %s104, 1
        %s1426 = smul.addr %s1425, 16
        %s1427 = scalar_lea.vmem [#allocation8], %s1426
        // Predicated region
        $region45: #{lstm_gdc_forward.1} parent=31 // pred_check
          %p1428 = pneg %p114
        $region46: #{lstm_gdc_forward.1} parent=31 // pred_check_branch
          %1430 = sbr.rel (%p1428) target = $region48
        $region47: #{lstm_gdc_forward.1} parent=31 // pred_region
          %s1432 = ssub.s32 256, 256
          %1433 = vsyncadd %s1424, %s1432
          %s1434 = smul.addr %s23, 2
          %s1435 = smul.addr %s1434, 128
          %s1436 = scalar_lea.hbm %s3, %s1435
          %s1437 = sshll.u32 %s1427, 4
          %s1438 = int_to_ptr.vmem [resolvable:$true] %s1437
          %1443 = dma.vmem_to_hbm [thread:$0]  %s1438, 256, %s1436, %s1424, 128, 128, 8
        $region48: #{lstm_gdc_forward.1} parent=31 // pred_fallthru
          _
      $region32: #{lstm_gdc_forward.1} parent=5 // pred_fallthru
        _
      %p1444 = scmp.le.s32.totalorder 2, %s18
      // Predicated region
      $region49: #{lstm_gdc_forward.1} parent=5 // pred_check
        %p1445 = pneg %p1444
      $region50: #{lstm_gdc_forward.1} parent=5 // pred_check_branch
        %1447 = sbr.rel (%p1445) target = $region52
      $region51: #{lstm_gdc_forward.1} parent=5 // pred_region
        %s1448 = ssub.s32 %s18, 2
        // Predicated region
        $region53: #{lstm_gdc_forward.1} parent=51 // pred_check
          %p1449 = pneg %p120
        $region54: #{lstm_gdc_forward.1} parent=51 // pred_check_branch
          %1451 = sbr.rel (%p1449) target = $region56
        $region55: #{lstm_gdc_forward.1} parent=51 // pred_region
          %s1452 = sand.u32 %s105, 1
          %s1453 = scalar_lea.sflag [#allocation4], %s1452
          %s1454 = sand.u32 %s105, 1
          %s1455 = smul.addr %s1454, 16
          %s1456 = scalar_lea.vmem [#allocation8], %s1455
          %1457 = dma.done %s1453, 256
        $region56: #{lstm_gdc_forward.1} parent=51 // pred_fallthru
          _
      $region52: #{lstm_gdc_forward.1} parent=5 // pred_fallthru
        _
    $region6: #{lstm_gdc_forward.1} parent=1 // loop_footer
      %s22 = sadd.s32 1, %s18
    $region7: #{lstm_gdc_forward.1} parent=1 // loop_footer_branch
      %17 = sbr.rel target = $region3
    $region8: #{lstm_gdc_forward.1} parent=1 // loop_exit
      _
    %1458 = vsyncpa [#allocation3], 1
    %s1459 = scalar_lea.sflag [#allocation3], 1
    %1460 = vsyncpa %s1459, 1
    %1461 = vsyncpa [#allocation6], 1
    %s1462 = scalar_lea.sflag [#allocation6], 1
    %1463 = vsyncpa %s1462, 1
    %1464 = vsyncpa [#allocation4], 1
    %s1465 = scalar_lea.sflag [#allocation4], 1
    %1466 = vsyncpa %s1465, 1

</llo_original>
